<compile_context>
chip_gen: v5e
topology: v5e:2x2
jax: 0.10.0
libtpu: 0.0.40
codegen_flags: <defaults>
</compile_context>

<pallas_src>
import functools

import jax
import jax.numpy as jnp
import numpy as np
from jax.experimental import pallas as pl
from jax.experimental.pallas import tpu as pltpu

# ----------------------------- configuration --------------------------------
MDIM = 16          # motion modulation dim (mdim)
PDIM = 16          # position modulation dim (pdim)
HIDDEN = 32        # hidden width of both implicit fields
DEPTH = 2          # number of ReLU hidden layers per FCBlock
Q_IN_POS = 2       # pos_field query dim
Q_IN_MOT = 1       # motion_field query dim (time)

N_FCBLOCK_LAYERS = DEPTH + 1                  # layers per FCBlock
N_LAYERS = 2 * (1 + 2 * N_FCBLOCK_LAYERS)     # 14 linear layers total

# rows of the packed 32-feature input slab
T_ROW = 0                     # t  at row 0
X_ROW = 1                     # x  at rows 1..2
M_ROW = 8                     # m  at rows 8..23 (8-aligned)
ONE_ROW = 31                  # constant-1 row (folds biases of fused layers)
assert M_ROW + MDIM <= ONE_ROW

FUSED_LAYERS = (0, 1, 7)      # qenc_m, psi_m[0], qenc_p -- all consume `inp`
REST_LAYERS = (2, 3, 4, 5, 6, 8, 9, 10, 11, 12, 13)
N_REST = len(REST_LAYERS)


# ----------------------------- parameter init -------------------------------
def _linear_init(key, din, dout):
    kw, kb = jax.random.split(key)
    w = jax.random.normal(kw, (din, dout), jnp.float32) / jnp.sqrt(din)
    b = 0.01 * jax.random.normal(kb, (1, dout), jnp.float32)
    return w, b


def _fcblock_init(key, din, hidden, dout, depth):
    """FCBlock: Linear(din,h)+ReLU, (depth-1)x[Linear(h,h)+ReLU], Linear(h,dout)."""
    dims = [din] + [hidden] * depth + [dout]
    params = []
    for a, b in zip(dims[:-1], dims[1:]):
        key, sub = jax.random.split(key)
        w, bias = _linear_init(sub, a, b)
        params += [w, bias]
    return key, params


def init_kmodule_params(key):
    """Flat, ordered list of (W, b) pairs for the whole KModule (W: [din, dout])."""
    params = []
    # motion_field = ImplicitNeuralModule(q_in=1, out=PDIM, mod=MDIM)
    key, sub = jax.random.split(key)
    w, b = _linear_init(sub, Q_IN_MOT, HIDDEN)                   # qenc_m   (layer 0)
    params += [w, b]
    key, p = _fcblock_init(key, MDIM, HIDDEN, HIDDEN, DEPTH)     # psi_m    (layers 1-3)
    params += p
    key, p = _fcblock_init(key, HIDDEN, HIDDEN, PDIM, DEPTH)     # theta_m  (layers 4-6)
    params += p
    # pos_field = ImplicitNeuralModule(q_in=2, out=1, mod=PDIM)
    key, sub = jax.random.split(key)
    w, b = _linear_init(sub, Q_IN_POS, HIDDEN)                   # qenc_p   (layer 7)
    params += [w, b]
    key, p = _fcblock_init(key, PDIM, HIDDEN, HIDDEN, DEPTH)     # psi_p    (layers 8-10)
    params += p
    key, p = _fcblock_init(key, HIDDEN, HIDDEN, 1, DEPTH)        # theta_p  (layers 11-13)
    params += p
    return params


# ----------------------------- weight packing --------------------------------
# Column offset (in the padded 32-feature space) of each fused layer's input.
_COL_OFF = {0: T_ROW, 1: M_ROW, 7: X_ROW}


def pack_params(params):
    """Pack all layers into three padded slabs:
       w_fused [96,32] bf16 : stacked transposed weights of layers 0/1/7, with
                              their biases folded into column ONE_ROW.
       w_slab  [11,32,32] bf16 : zero-padded transposed weights of the rest.
       b_slab  [11,32,1]  f32  : zero-padded biases of the rest."""
    n_layers = len(params) // 2
    assert n_layers == N_LAYERS
    w_fused = np.zeros((len(FUSED_LAYERS) * HIDDEN, HIDDEN), np.float32)
    w_slab = np.zeros((N_REST, HIDDEN, HIDDEN), np.float32)
    b_slab = np.zeros((N_REST, HIDDEN, 1), np.float32)

    for g, l in enumerate(FUSED_LAYERS):
        w = np.asarray(params[2 * l])        # (din, dout)
        b = np.asarray(params[2 * l + 1])    # (1, dout)
        din, dout = w.shape
        off = _COL_OFF[l]
        assert off + din <= ONE_ROW and dout <= HIDDEN
        w_fused[g * HIDDEN:g * HIDDEN + dout, off:off + din] = w.T
        w_fused[g * HIDDEN:g * HIDDEN + dout, ONE_ROW] = b[0]   # bias fold

    for s, l in enumerate(REST_LAYERS):
        w = np.asarray(params[2 * l])        # (din, dout)
        b = np.asarray(params[2 * l + 1])    # (1, dout)
        din, dout = w.shape
        w_slab[s, :dout, :din] = w.T
        b_slab[s, :dout, 0] = b[0]
        # zero-padding invariant: padded rows/cols must stay zero (pmods rows
        # 16..31 and the unused output rows of the last layer rely on it).
        assert not w_slab[s, dout:, :].any() and not w_slab[s, :, din:].any()
        assert not b_slab[s, dout:, 0].any()

    return (jnp.asarray(w_fused, jnp.bfloat16),
            jnp.asarray(w_slab, jnp.bfloat16),
            jnp.asarray(b_slab, jnp.float32))


# ----------------------------- Pallas kernel --------------------------------
def kmodule_kernel(inp_ref, wf_ref, w_ref, b_ref, out_ref, *, n_sub, st):
    # inp_ref: (32, bt) bf16 -- row 0 = t, rows 1-2 = x, rows 8-23 = m, row 31 = 1
    # wf_ref:  (96, 32)      bf16 fused qenc_m / psi_m[0] / qenc_p weights (+bias)
    # w_ref:   (11, 32, 32)  bf16 padded weight slab (remaining layers)
    # b_ref:   (11, 32, 1)   f32  padded bias slab
    # out_ref: (1, bt) f32
    wf = wf_ref[...]                                   # loaded once per step

    def layer(slab_idx, x, relu=True, out_bf16=True):
        # bf16 MXU operands, f32 accumulation; elementwise math in f32.
        y = jnp.dot(w_ref[slab_idx], x.astype(jnp.bfloat16),
                    preferred_element_type=jnp.float32)
        y = y + b_ref[slab_idx]
        if relu:
            y = jnp.maximum(y, 0.0)
        return y.astype(jnp.bfloat16) if out_bf16 else y

    # n_sub INDEPENDENT batch sub-tile chains, statically unrolled so the LLO
    # scheduler interleaves their MXU pushes and hides fill/drain latency.
    for s in range(n_sub):
        inp = inp_ref[:, s * st:(s + 1) * st]          # (32, st) bf16

        # Fused qenc_m / psi_m[0] / qenc_p: one (96,32)@(32,st) matmul; biases
        # arrive via the constant-1 input row.
        fused = jnp.dot(wf, inp, preferred_element_type=jnp.float32)   # (96, st)
        h = fused[0 * HIDDEN:1 * HIDDEN]                               # qenc_m out
        p1 = jnp.maximum(fused[1 * HIDDEN:2 * HIDDEN], 0.0).astype(jnp.bfloat16)
        hp = fused[2 * HIDDEN:3 * HIDDEN]                              # qenc_p out

        # ---------------- motion_field(t, m) -> pmods ------------------------
        phi = layer(1, layer(0, p1), relu=False, out_bf16=False)       # psi_m[1:3]
        pmods = layer(4, layer(3, layer(2, (h + phi).astype(jnp.bfloat16))),
                      relu=False)                                      # theta_m

        # ---------------- vmap(pos_field)(x, pmods) -> y ----------------------
        phip = layer(7, layer(6, layer(5, pmods)), relu=False, out_bf16=False)
        y = layer(10, layer(9, layer(8, (hp + phip).astype(jnp.bfloat16))),
                  relu=False, out_bf16=False)                          # theta_p

        # ---------------- Softplus, lane-dense store --------------------------
        y0 = y[0:1, :]
        out_ref[:, s * st:(s + 1) * st] = (
            jnp.log1p(jnp.exp(-jnp.abs(y0))) + jnp.maximum(y0, 0.0))


def kmodule_forward(qs, m, w_fused, w_slab, b_slab, *, bt=512, n_sub=2):
    assert bt % n_sub == 0
    st = bt // n_sub
    assert st % 128 == 0, "sub-tile width must be a multiple of the 128-lane width"

    B = qs.shape[0]
    n_tiles = max(1, -(-B // bt))       # cdiv, at least one tile
    Bp = n_tiles * bt

    # Pack inputs into a feature-major (batch-in-lanes) slab, zero-padded to 32
    # features and to a multiple of bt along the batch/lane axis; ship as bf16.
    inp = jnp.zeros((HIDDEN, Bp), jnp.float32)
    inp = inp.at[T_ROW, :B].set(qs[:, 0])
    inp = inp.at[X_ROW:X_ROW + Q_IN_POS, :B].set(qs[:, 1:1 + Q_IN_POS].T)
    inp = inp.at[M_ROW:M_ROW + MDIM, :B].set(m.T)
    inp = inp.at[ONE_ROW, :].set(1.0)               # constant-1 row (bias fold)
    inp = inp.astype(jnp.bfloat16)

    kernel = functools.partial(kmodule_kernel, n_sub=n_sub, st=st)

    out_t = pl.pallas_call(
        kernel,
        out_shape=jax.ShapeDtypeStruct((1, Bp), jnp.float32),
        grid_spec=pltpu.PrefetchScalarGridSpec(
            num_scalar_prefetch=0,
            grid=(n_tiles,),
            in_specs=[
                pl.BlockSpec((HIDDEN, bt), lambda i: (0, i)),
                pl.BlockSpec(w_fused.shape, lambda i: (0, 0)),       # resident
                pl.BlockSpec(w_slab.shape, lambda i: (0, 0, 0)),     # resident
                pl.BlockSpec(b_slab.shape, lambda i: (0, 0, 0)),     # resident
            ],
            out_specs=pl.BlockSpec((1, bt), lambda i: (0, i)),
        ),
        compiler_params=pltpu.CompilerParams(
            dimension_semantics=("parallel",),
        ),
    )(inp, w_fused, w_slab, b_slab)

    return out_t[0, :B][:, None]        # (B, 1), matching the module's output


# ----------------------------- pure-JAX reference ---------------------------
def _fcblock_ref(x, params):
    n = len(params) // 2
    for l in range(n):
        x = x @ params[2 * l] + params[2 * l + 1]
        if l < n - 1:
            x = jnp.maximum(x, 0.0)
    return x


def kmodule_ref(qs, m, params):
    npl = 2 * N_FCBLOCK_LAYERS
    i = 0
    qenc_m = params[i:i + 2]; i += 2
    psi_m = params[i:i + npl]; i += npl
    th_m = params[i:i + npl]; i += npl
    qenc_p = params[i:i + 2]; i += 2
    psi_p = params[i:i + npl]; i += npl
    th_p = params[i:i + npl]; i += npl

    t = qs[:, 0:1]
    x = qs[:, 1:1 + Q_IN_POS]
    h = t @ qenc_m[0] + qenc_m[1]
    pmods = _fcblock_ref(h + _fcblock_ref(m, psi_m), th_m)
    hp = x @ qenc_p[0] + qenc_p[1]
    y = _fcblock_ref(hp + _fcblock_ref(pmods, psi_p), th_p)
    return jax.nn.softplus(y)


# ----------------------------------- main ------------------------------------
if __name__ == "__main__":
    key = jax.random.PRNGKey(0)
    kq, km, kp = jax.random.split(key, 3)

    # 4 even "parallel" grid steps of bt=512 -> >=2 steps per v7x TensorCore,
    # each step running 2 interleaved independent 256-lane chains.
    B = 2048
    qs = jax.random.normal(kq, (B, 1 + Q_IN_POS), jnp.float32)   # (2048, 3)
    m = jax.random.normal(km, (B, MDIM), jnp.float32)            # (2048, 16)

    params = init_kmodule_params(kp)
    w_fused, w_slab, b_slab = pack_params(params)

    out = kmodule_forward(qs, m, w_fused, w_slab, b_slab, bt=512, n_sub=2)
    out = jax.block_until_ready(out)

    ref = kmodule_ref(qs, m, params)
    assert out.shape == (B, 1), out.shape
    # bf16 MXU operands (f32 accumulation) vs. pure-f32 reference
    assert jnp.allclose(out, ref, atol=5e-2, rtol=5e-2), float(
        jnp.max(jnp.abs(out - ref)))

    print("KERNEL_OK")
</pallas_src>

<mosaic_0001>
module attributes {stable_mosaic.version = 11 : i64} {
  func.func @kmodule_kernel(%arg0: i32, %arg1: memref<32x512xbf16, #tpu.memory_space<vmem>>, %arg2: memref<96x32xbf16, #tpu.memory_space<vmem>>, %arg3: memref<11x32x32xbf16, #tpu.memory_space<vmem>>, %arg4: memref<11x32x1xf32, #tpu.memory_space<vmem>>, %arg5: memref<1x512xf32, #tpu.memory_space<vmem>>) attributes {dimension_semantics = [#tpu.dimension_semantics<parallel>], iteration_bounds = array<i64: 4>, scalar_prefetch = 0 : i64, scratch_operands = 0 : i64, tpu.core_type = #tpu.core_type<tc>, window_params = [{transform_indices = @transform_0, window_bounds = array<i64: 32, 512>}, {pipeline_mode = #tpu.pipeline_mode<synchronous>, transform_indices = @transform_1, window_bounds = array<i64: 96, 32>}, {pipeline_mode = #tpu.pipeline_mode<synchronous>, transform_indices = @transform_2, window_bounds = array<i64: 11, 32, 32>}, {pipeline_mode = #tpu.pipeline_mode<synchronous>, transform_indices = @transform_3, window_bounds = array<i64: 11, 32, 1>}, {transform_indices = @transform_4, window_bounds = array<i64: 1, 512>}]} {
    %c0 = arith.constant 0 : index
    %c0_0 = arith.constant 0 : index
    %0 = vector.load %arg2[%c0, %c0_0] : memref<96x32xbf16, #tpu.memory_space<vmem>>, vector<96x32xbf16>
    %c0_1 = arith.constant 0 : index
    %c0_2 = arith.constant 0 : index
    %1 = vector.load %arg1[%c0_1, %c0_2] : memref<32x512xbf16, #tpu.memory_space<vmem>>, vector<32x256xbf16>
    %cst = arith.constant dense<0.000000e+00> : vector<96x256xf32>
    %2 = tpu.matmul %0, %1, %cst {dimension_numbers = #tpu.dot_dimension_numbers<[1], [0], [0], [1], [0, 0, 1, 1], [], []>} : vector<96x32xbf16>, vector<32x256xbf16>, vector<96x256xf32> -> vector<96x256xf32>
    %3 = vector.extract_strided_slice %2 {offsets = [0, 0], sizes = [32, 256], strides = [1, 1]} : vector<96x256xf32> to vector<32x256xf32>
    %4 = vector.extract_strided_slice %2 {offsets = [32, 0], sizes = [32, 256], strides = [1, 1]} : vector<96x256xf32> to vector<32x256xf32>
    %cst_3 = arith.constant 0.000000e+00 : f32
    %5 = vector.broadcast %cst_3 : f32 to vector<32x256xf32>
    %6 = arith.maximumf %4, %5 : vector<32x256xf32>
    %7 = arith.truncf %6 : vector<32x256xf32> to vector<32x256xbf16>
    %8 = vector.extract_strided_slice %2 {offsets = [64, 0], sizes = [32, 256], strides = [1, 1]} : vector<96x256xf32> to vector<32x256xf32>
    %c0_4 = arith.constant 0 : index
    %c0_5 = arith.constant 0 : index
    %c0_6 = arith.constant 0 : index
    %9 = vector.load %arg3[%c0_4, %c0_5, %c0_6] : memref<11x32x32xbf16, #tpu.memory_space<vmem>>, vector<1x32x32xbf16>
    %10 = vector.shape_cast %9 : vector<1x32x32xbf16> to vector<32x32xbf16>
    %cst_7 = arith.constant dense<0.000000e+00> : vector<32x256xf32>
    %11 = tpu.matmul %10, %7, %cst_7 {dimension_numbers = #tpu.dot_dimension_numbers<[1], [0], [0], [1], [0, 0, 1, 1], [], []>} : vector<32x32xbf16>, vector<32x256xbf16>, vector<32x256xf32> -> vector<32x256xf32>
    %c0_8 = arith.constant 0 : index
    %c0_9 = arith.constant 0 : index
    %c0_10 = arith.constant 0 : index
    %12 = vector.load %arg4[%c0_8, %c0_9, %c0_10] : memref<11x32x1xf32, #tpu.memory_space<vmem>>, vector<1x32x1xf32>
    %13 = vector.shape_cast %12 : vector<1x32x1xf32> to vector<32x1xf32>
    %14 = vector.broadcast %13 : vector<32x1xf32> to vector<32x256xf32>
    %15 = arith.addf %11, %14 : vector<32x256xf32>
    %cst_11 = arith.constant 0.000000e+00 : f32
    %16 = vector.broadcast %cst_11 : f32 to vector<32x256xf32>
    %17 = arith.maximumf %15, %16 : vector<32x256xf32>
    %18 = arith.truncf %17 : vector<32x256xf32> to vector<32x256xbf16>
    %c1 = arith.constant 1 : index
    %c0_12 = arith.constant 0 : index
    %c0_13 = arith.constant 0 : index
    %19 = vector.load %arg3[%c1, %c0_12, %c0_13] : memref<11x32x32xbf16, #tpu.memory_space<vmem>>, vector<1x32x32xbf16>
    %20 = vector.shape_cast %19 : vector<1x32x32xbf16> to vector<32x32xbf16>
    %cst_14 = arith.constant dense<0.000000e+00> : vector<32x256xf32>
    %21 = tpu.matmul %20, %18, %cst_14 {dimension_numbers = #tpu.dot_dimension_numbers<[1], [0], [0], [1], [0, 0, 1, 1], [], []>} : vector<32x32xbf16>, vector<32x256xbf16>, vector<32x256xf32> -> vector<32x256xf32>
    %c1_15 = arith.constant 1 : index
    %c0_16 = arith.constant 0 : index
    %c0_17 = arith.constant 0 : index
    %22 = vector.load %arg4[%c1_15, %c0_16, %c0_17] : memref<11x32x1xf32, #tpu.memory_space<vmem>>, vector<1x32x1xf32>
    %23 = vector.shape_cast %22 : vector<1x32x1xf32> to vector<32x1xf32>
    %24 = vector.broadcast %23 : vector<32x1xf32> to vector<32x256xf32>
    %25 = arith.addf %21, %24 : vector<32x256xf32>
    %26 = arith.addf %3, %25 : vector<32x256xf32>
    %27 = arith.truncf %26 : vector<32x256xf32> to vector<32x256xbf16>
    %c2 = arith.constant 2 : index
    %c0_18 = arith.constant 0 : index
    %c0_19 = arith.constant 0 : index
    %28 = vector.load %arg3[%c2, %c0_18, %c0_19] : memref<11x32x32xbf16, #tpu.memory_space<vmem>>, vector<1x32x32xbf16>
    %29 = vector.shape_cast %28 : vector<1x32x32xbf16> to vector<32x32xbf16>
    %cst_20 = arith.constant dense<0.000000e+00> : vector<32x256xf32>
    %30 = tpu.matmul %29, %27, %cst_20 {dimension_numbers = #tpu.dot_dimension_numbers<[1], [0], [0], [1], [0, 0, 1, 1], [], []>} : vector<32x32xbf16>, vector<32x256xbf16>, vector<32x256xf32> -> vector<32x256xf32>
    %c2_21 = arith.constant 2 : index
    %c0_22 = arith.constant 0 : index
    %c0_23 = arith.constant 0 : index
    %31 = vector.load %arg4[%c2_21, %c0_22, %c0_23] : memref<11x32x1xf32, #tpu.memory_space<vmem>>, vector<1x32x1xf32>
    %32 = vector.shape_cast %31 : vector<1x32x1xf32> to vector<32x1xf32>
    %33 = vector.broadcast %32 : vector<32x1xf32> to vector<32x256xf32>
    %34 = arith.addf %30, %33 : vector<32x256xf32>
    %cst_24 = arith.constant 0.000000e+00 : f32
    %35 = vector.broadcast %cst_24 : f32 to vector<32x256xf32>
    %36 = arith.maximumf %34, %35 : vector<32x256xf32>
    %37 = arith.truncf %36 : vector<32x256xf32> to vector<32x256xbf16>
    %c3 = arith.constant 3 : index
    %c0_25 = arith.constant 0 : index
    %c0_26 = arith.constant 0 : index
    %38 = vector.load %arg3[%c3, %c0_25, %c0_26] : memref<11x32x32xbf16, #tpu.memory_space<vmem>>, vector<1x32x32xbf16>
    %39 = vector.shape_cast %38 : vector<1x32x32xbf16> to vector<32x32xbf16>
    %cst_27 = arith.constant dense<0.000000e+00> : vector<32x256xf32>
    %40 = tpu.matmul %39, %37, %cst_27 {dimension_numbers = #tpu.dot_dimension_numbers<[1], [0], [0], [1], [0, 0, 1, 1], [], []>} : vector<32x32xbf16>, vector<32x256xbf16>, vector<32x256xf32> -> vector<32x256xf32>
    %c3_28 = arith.constant 3 : index
    %c0_29 = arith.constant 0 : index
    %c0_30 = arith.constant 0 : index
    %41 = vector.load %arg4[%c3_28, %c0_29, %c0_30] : memref<11x32x1xf32, #tpu.memory_space<vmem>>, vector<1x32x1xf32>
    %42 = vector.shape_cast %41 : vector<1x32x1xf32> to vector<32x1xf32>
    %43 = vector.broadcast %42 : vector<32x1xf32> to vector<32x256xf32>
    %44 = arith.addf %40, %43 : vector<32x256xf32>
    %cst_31 = arith.constant 0.000000e+00 : f32
    %45 = vector.broadcast %cst_31 : f32 to vector<32x256xf32>
    %46 = arith.maximumf %44, %45 : vector<32x256xf32>
    %47 = arith.truncf %46 : vector<32x256xf32> to vector<32x256xbf16>
    %c4 = arith.constant 4 : index
    %c0_32 = arith.constant 0 : index
    %c0_33 = arith.constant 0 : index
    %48 = vector.load %arg3[%c4, %c0_32, %c0_33] : memref<11x32x32xbf16, #tpu.memory_space<vmem>>, vector<1x32x32xbf16>
    %49 = vector.shape_cast %48 : vector<1x32x32xbf16> to vector<32x32xbf16>
    %cst_34 = arith.constant dense<0.000000e+00> : vector<32x256xf32>
    %50 = tpu.matmul %49, %47, %cst_34 {dimension_numbers = #tpu.dot_dimension_numbers<[1], [0], [0], [1], [0, 0, 1, 1], [], []>} : vector<32x32xbf16>, vector<32x256xbf16>, vector<32x256xf32> -> vector<32x256xf32>
    %c4_35 = arith.constant 4 : index
    %c0_36 = arith.constant 0 : index
    %c0_37 = arith.constant 0 : index
    %51 = vector.load %arg4[%c4_35, %c0_36, %c0_37] : memref<11x32x1xf32, #tpu.memory_space<vmem>>, vector<1x32x1xf32>
    %52 = vector.shape_cast %51 : vector<1x32x1xf32> to vector<32x1xf32>
    %53 = vector.broadcast %52 : vector<32x1xf32> to vector<32x256xf32>
    %54 = arith.addf %50, %53 : vector<32x256xf32>
    %55 = arith.truncf %54 : vector<32x256xf32> to vector<32x256xbf16>
    %c5 = arith.constant 5 : index
    %c0_38 = arith.constant 0 : index
    %c0_39 = arith.constant 0 : index
    %56 = vector.load %arg3[%c5, %c0_38, %c0_39] : memref<11x32x32xbf16, #tpu.memory_space<vmem>>, vector<1x32x32xbf16>
    %57 = vector.shape_cast %56 : vector<1x32x32xbf16> to vector<32x32xbf16>
    %cst_40 = arith.constant dense<0.000000e+00> : vector<32x256xf32>
    %58 = tpu.matmul %57, %55, %cst_40 {dimension_numbers = #tpu.dot_dimension_numbers<[1], [0], [0], [1], [0, 0, 1, 1], [], []>} : vector<32x32xbf16>, vector<32x256xbf16>, vector<32x256xf32> -> vector<32x256xf32>
    %c5_41 = arith.constant 5 : index
    %c0_42 = arith.constant 0 : index
    %c0_43 = arith.constant 0 : index
    %59 = vector.load %arg4[%c5_41, %c0_42, %c0_43] : memref<11x32x1xf32, #tpu.memory_space<vmem>>, vector<1x32x1xf32>
    %60 = vector.shape_cast %59 : vector<1x32x1xf32> to vector<32x1xf32>
    %61 = vector.broadcast %60 : vector<32x1xf32> to vector<32x256xf32>
    %62 = arith.addf %58, %61 : vector<32x256xf32>
    %cst_44 = arith.constant 0.000000e+00 : f32
    %63 = vector.broadcast %cst_44 : f32 to vector<32x256xf32>
    %64 = arith.maximumf %62, %63 : vector<32x256xf32>
    %65 = arith.truncf %64 : vector<32x256xf32> to vector<32x256xbf16>
    %c6 = arith.constant 6 : index
    %c0_45 = arith.constant 0 : index
    %c0_46 = arith.constant 0 : index
    %66 = vector.load %arg3[%c6, %c0_45, %c0_46] : memref<11x32x32xbf16, #tpu.memory_space<vmem>>, vector<1x32x32xbf16>
    %67 = vector.shape_cast %66 : vector<1x32x32xbf16> to vector<32x32xbf16>
    %cst_47 = arith.constant dense<0.000000e+00> : vector<32x256xf32>
    %68 = tpu.matmul %67, %65, %cst_47 {dimension_numbers = #tpu.dot_dimension_numbers<[1], [0], [0], [1], [0, 0, 1, 1], [], []>} : vector<32x32xbf16>, vector<32x256xbf16>, vector<32x256xf32> -> vector<32x256xf32>
    %c6_48 = arith.constant 6 : index
    %c0_49 = arith.constant 0 : index
    %c0_50 = arith.constant 0 : index
    %69 = vector.load %arg4[%c6_48, %c0_49, %c0_50] : memref<11x32x1xf32, #tpu.memory_space<vmem>>, vector<1x32x1xf32>
    %70 = vector.shape_cast %69 : vector<1x32x1xf32> to vector<32x1xf32>
    %71 = vector.broadcast %70 : vector<32x1xf32> to vector<32x256xf32>
    %72 = arith.addf %68, %71 : vector<32x256xf32>
    %cst_51 = arith.constant 0.000000e+00 : f32
    %73 = vector.broadcast %cst_51 : f32 to vector<32x256xf32>
    %74 = arith.maximumf %72, %73 : vector<32x256xf32>
    %75 = arith.truncf %74 : vector<32x256xf32> to vector<32x256xbf16>
    %c7 = arith.constant 7 : index
    %c0_52 = arith.constant 0 : index
    %c0_53 = arith.constant 0 : index
    %76 = vector.load %arg3[%c7, %c0_52, %c0_53] : memref<11x32x32xbf16, #tpu.memory_space<vmem>>, vector<1x32x32xbf16>
    %77 = vector.shape_cast %76 : vector<1x32x32xbf16> to vector<32x32xbf16>
    %cst_54 = arith.constant dense<0.000000e+00> : vector<32x256xf32>
    %78 = tpu.matmul %77, %75, %cst_54 {dimension_numbers = #tpu.dot_dimension_numbers<[1], [0], [0], [1], [0, 0, 1, 1], [], []>} : vector<32x32xbf16>, vector<32x256xbf16>, vector<32x256xf32> -> vector<32x256xf32>
    %c7_55 = arith.constant 7 : index
    %c0_56 = arith.constant 0 : index
    %c0_57 = arith.constant 0 : index
    %79 = vector.load %arg4[%c7_55, %c0_56, %c0_57] : memref<11x32x1xf32, #tpu.memory_space<vmem>>, vector<1x32x1xf32>
    %80 = vector.shape_cast %79 : vector<1x32x1xf32> to vector<32x1xf32>
    %81 = vector.broadcast %80 : vector<32x1xf32> to vector<32x256xf32>
    %82 = arith.addf %78, %81 : vector<32x256xf32>
    %83 = arith.addf %8, %82 : vector<32x256xf32>
    %84 = arith.truncf %83 : vector<32x256xf32> to vector<32x256xbf16>
    %c8 = arith.constant 8 : index
    %c0_58 = arith.constant 0 : index
    %c0_59 = arith.constant 0 : index
    %85 = vector.load %arg3[%c8, %c0_58, %c0_59] : memref<11x32x32xbf16, #tpu.memory_space<vmem>>, vector<1x32x32xbf16>
    %86 = vector.shape_cast %85 : vector<1x32x32xbf16> to vector<32x32xbf16>
    %cst_60 = arith.constant dense<0.000000e+00> : vector<32x256xf32>
    %87 = tpu.matmul %86, %84, %cst_60 {dimension_numbers = #tpu.dot_dimension_numbers<[1], [0], [0], [1], [0, 0, 1, 1], [], []>} : vector<32x32xbf16>, vector<32x256xbf16>, vector<32x256xf32> -> vector<32x256xf32>
    %c8_61 = arith.constant 8 : index
    %c0_62 = arith.constant 0 : index
    %c0_63 = arith.constant 0 : index
    %88 = vector.load %arg4[%c8_61, %c0_62, %c0_63] : memref<11x32x1xf32, #tpu.memory_space<vmem>>, vector<1x32x1xf32>
    %89 = vector.shape_cast %88 : vector<1x32x1xf32> to vector<32x1xf32>
    %90 = vector.broadcast %89 : vector<32x1xf32> to vector<32x256xf32>
    %91 = arith.addf %87, %90 : vector<32x256xf32>
    %cst_64 = arith.constant 0.000000e+00 : f32
    %92 = vector.broadcast %cst_64 : f32 to vector<32x256xf32>
    %93 = arith.maximumf %91, %92 : vector<32x256xf32>
    %94 = arith.truncf %93 : vector<32x256xf32> to vector<32x256xbf16>
    %c9 = arith.constant 9 : index
    %c0_65 = arith.constant 0 : index
    %c0_66 = arith.constant 0 : index
    %95 = vector.load %arg3[%c9, %c0_65, %c0_66] : memref<11x32x32xbf16, #tpu.memory_space<vmem>>, vector<1x32x32xbf16>
    %96 = vector.shape_cast %95 : vector<1x32x32xbf16> to vector<32x32xbf16>
    %cst_67 = arith.constant dense<0.000000e+00> : vector<32x256xf32>
    %97 = tpu.matmul %96, %94, %cst_67 {dimension_numbers = #tpu.dot_dimension_numbers<[1], [0], [0], [1], [0, 0, 1, 1], [], []>} : vector<32x32xbf16>, vector<32x256xbf16>, vector<32x256xf32> -> vector<32x256xf32>
    %c9_68 = arith.constant 9 : index
    %c0_69 = arith.constant 0 : index
    %c0_70 = arith.constant 0 : index
    %98 = vector.load %arg4[%c9_68, %c0_69, %c0_70] : memref<11x32x1xf32, #tpu.memory_space<vmem>>, vector<1x32x1xf32>
    %99 = vector.shape_cast %98 : vector<1x32x1xf32> to vector<32x1xf32>
    %100 = vector.broadcast %99 : vector<32x1xf32> to vector<32x256xf32>
    %101 = arith.addf %97, %100 : vector<32x256xf32>
    %cst_71 = arith.constant 0.000000e+00 : f32
    %102 = vector.broadcast %cst_71 : f32 to vector<32x256xf32>
    %103 = arith.maximumf %101, %102 : vector<32x256xf32>
    %104 = arith.truncf %103 : vector<32x256xf32> to vector<32x256xbf16>
    %c10 = arith.constant 10 : index
    %c0_72 = arith.constant 0 : index
    %c0_73 = arith.constant 0 : index
    %105 = vector.load %arg3[%c10, %c0_72, %c0_73] : memref<11x32x32xbf16, #tpu.memory_space<vmem>>, vector<1x32x32xbf16>
    %106 = vector.shape_cast %105 : vector<1x32x32xbf16> to vector<32x32xbf16>
    %cst_74 = arith.constant dense<0.000000e+00> : vector<32x256xf32>
    %107 = tpu.matmul %106, %104, %cst_74 {dimension_numbers = #tpu.dot_dimension_numbers<[1], [0], [0], [1], [0, 0, 1, 1], [], []>} : vector<32x32xbf16>, vector<32x256xbf16>, vector<32x256xf32> -> vector<32x256xf32>
    %c10_75 = arith.constant 10 : index
    %c0_76 = arith.constant 0 : index
    %c0_77 = arith.constant 0 : index
    %108 = vector.load %arg4[%c10_75, %c0_76, %c0_77] : memref<11x32x1xf32, #tpu.memory_space<vmem>>, vector<1x32x1xf32>
    %109 = vector.shape_cast %108 : vector<1x32x1xf32> to vector<32x1xf32>
    %110 = vector.broadcast %109 : vector<32x1xf32> to vector<32x256xf32>
    %111 = arith.addf %107, %110 : vector<32x256xf32>
    %112 = vector.extract_strided_slice %111 {offsets = [0, 0], sizes = [1, 256], strides = [1, 1]} : vector<32x256xf32> to vector<1x256xf32>
    %113 = math.absf %112 : vector<1x256xf32>
    %cst_78 = arith.constant 0.000000e+00 : f32
    %114 = vector.broadcast %cst_78 : f32 to vector<1x256xf32>
    %115 = arith.subf %114, %113 : vector<1x256xf32>
    %116 = math.exp %115 : vector<1x256xf32>
    %117 = math.log1p %116 : vector<1x256xf32>
    %cst_79 = arith.constant 0.000000e+00 : f32
    %118 = vector.broadcast %cst_79 : f32 to vector<1x256xf32>
    %119 = arith.maximumf %112, %118 : vector<1x256xf32>
    %120 = arith.addf %117, %119 : vector<1x256xf32>
    %c0_80 = arith.constant 0 : index
    %c0_81 = arith.constant 0 : index
    %121 = vector.load %arg5[%c0_80, %c0_81] : memref<1x512xf32, #tpu.memory_space<vmem>>, vector<1x256xf32>
    tpu.vector_store %arg5[%c0_80, %c0_81], %120 {strides = array<i32>} : memref<1x512xf32, #tpu.memory_space<vmem>>, vector<1x256xf32>,
    %c0_82 = arith.constant 0 : index
    %c256 = arith.constant 256 : index
    %122 = vector.load %arg1[%c0_82, %c256] : memref<32x512xbf16, #tpu.memory_space<vmem>>, vector<32x256xbf16>
    %cst_83 = arith.constant dense<0.000000e+00> : vector<96x256xf32>
    %123 = tpu.matmul %0, %122, %cst_83 {dimension_numbers = #tpu.dot_dimension_numbers<[1], [0], [0], [1], [0, 0, 1, 1], [], []>} : vector<96x32xbf16>, vector<32x256xbf16>, vector<96x256xf32> -> vector<96x256xf32>
    %124 = vector.extract_strided_slice %123 {offsets = [0, 0], sizes = [32, 256], strides = [1, 1]} : vector<96x256xf32> to vector<32x256xf32>
    %125 = vector.extract_strided_slice %123 {offsets = [32, 0], sizes = [32, 256], strides = [1, 1]} : vector<96x256xf32> to vector<32x256xf32>
    %cst_84 = arith.constant 0.000000e+00 : f32
    %126 = vector.broadcast %cst_84 : f32 to vector<32x256xf32>
    %127 = arith.maximumf %125, %126 : vector<32x256xf32>
    %128 = arith.truncf %127 : vector<32x256xf32> to vector<32x256xbf16>
    %129 = vector.extract_strided_slice %123 {offsets = [64, 0], sizes = [32, 256], strides = [1, 1]} : vector<96x256xf32> to vector<32x256xf32>
    %c0_85 = arith.constant 0 : index
    %c0_86 = arith.constant 0 : index
    %c0_87 = arith.constant 0 : index
    %130 = vector.load %arg3[%c0_85, %c0_86, %c0_87] : memref<11x32x32xbf16, #tpu.memory_space<vmem>>, vector<1x32x32xbf16>
    %131 = vector.shape_cast %130 : vector<1x32x32xbf16> to vector<32x32xbf16>
    %cst_88 = arith.constant dense<0.000000e+00> : vector<32x256xf32>
    %132 = tpu.matmul %131, %128, %cst_88 {dimension_numbers = #tpu.dot_dimension_numbers<[1], [0], [0], [1], [0, 0, 1, 1], [], []>} : vector<32x32xbf16>, vector<32x256xbf16>, vector<32x256xf32> -> vector<32x256xf32>
    %c0_89 = arith.constant 0 : index
    %c0_90 = arith.constant 0 : index
    %c0_91 = arith.constant 0 : index
    %133 = vector.load %arg4[%c0_89, %c0_90, %c0_91] : memref<11x32x1xf32, #tpu.memory_space<vmem>>, vector<1x32x1xf32>
    %134 = vector.shape_cast %133 : vector<1x32x1xf32> to vector<32x1xf32>
    %135 = vector.broadcast %134 : vector<32x1xf32> to vector<32x256xf32>
    %136 = arith.addf %132, %135 : vector<32x256xf32>
    %cst_92 = arith.constant 0.000000e+00 : f32
    %137 = vector.broadcast %cst_92 : f32 to vector<32x256xf32>
    %138 = arith.maximumf %136, %137 : vector<32x256xf32>
    %139 = arith.truncf %138 : vector<32x256xf32> to vector<32x256xbf16>
    %c1_93 = arith.constant 1 : index
    %c0_94 = arith.constant 0 : index
    %c0_95 = arith.constant 0 : index
    %140 = vector.load %arg3[%c1_93, %c0_94, %c0_95] : memref<11x32x32xbf16, #tpu.memory_space<vmem>>, vector<1x32x32xbf16>
    %141 = vector.shape_cast %140 : vector<1x32x32xbf16> to vector<32x32xbf16>
    %cst_96 = arith.constant dense<0.000000e+00> : vector<32x256xf32>
    %142 = tpu.matmul %141, %139, %cst_96 {dimension_numbers = #tpu.dot_dimension_numbers<[1], [0], [0], [1], [0, 0, 1, 1], [], []>} : vector<32x32xbf16>, vector<32x256xbf16>, vector<32x256xf32> -> vector<32x256xf32>
    %c1_97 = arith.constant 1 : index
    %c0_98 = arith.constant 0 : index
    %c0_99 = arith.constant 0 : index
    %143 = vector.load %arg4[%c1_97, %c0_98, %c0_99] : memref<11x32x1xf32, #tpu.memory_space<vmem>>, vector<1x32x1xf32>
    %144 = vector.shape_cast %143 : vector<1x32x1xf32> to vector<32x1xf32>
    %145 = vector.broadcast %144 : vector<32x1xf32> to vector<32x256xf32>
    %146 = arith.addf %142, %145 : vector<32x256xf32>
    %147 = arith.addf %124, %146 : vector<32x256xf32>
    %148 = arith.truncf %147 : vector<32x256xf32> to vector<32x256xbf16>
    %c2_100 = arith.constant 2 : index
    %c0_101 = arith.constant 0 : index
    %c0_102 = arith.constant 0 : index
    %149 = vector.load %arg3[%c2_100, %c0_101, %c0_102] : memref<11x32x32xbf16, #tpu.memory_space<vmem>>, vector<1x32x32xbf16>
    %150 = vector.shape_cast %149 : vector<1x32x32xbf16> to vector<32x32xbf16>
    %cst_103 = arith.constant dense<0.000000e+00> : vector<32x256xf32>
    %151 = tpu.matmul %150, %148, %cst_103 {dimension_numbers = #tpu.dot_dimension_numbers<[1], [0], [0], [1], [0, 0, 1, 1], [], []>} : vector<32x32xbf16>, vector<32x256xbf16>, vector<32x256xf32> -> vector<32x256xf32>
    %c2_104 = arith.constant 2 : index
    %c0_105 = arith.constant 0 : index
    %c0_106 = arith.constant 0 : index
    %152 = vector.load %arg4[%c2_104, %c0_105, %c0_106] : memref<11x32x1xf32, #tpu.memory_space<vmem>>, vector<1x32x1xf32>
    %153 = vector.shape_cast %152 : vector<1x32x1xf32> to vector<32x1xf32>
    %154 = vector.broadcast %153 : vector<32x1xf32> to vector<32x256xf32>
    %155 = arith.addf %151, %154 : vector<32x256xf32>
    %cst_107 = arith.constant 0.000000e+00 : f32
    %156 = vector.broadcast %cst_107 : f32 to vector<32x256xf32>
    %157 = arith.maximumf %155, %156 : vector<32x256xf32>
    %158 = arith.truncf %157 : vector<32x256xf32> to vector<32x256xbf16>
    %c3_108 = arith.constant 3 : index
    %c0_109 = arith.constant 0 : index
    %c0_110 = arith.constant 0 : index
    %159 = vector.load %arg3[%c3_108, %c0_109, %c0_110] : memref<11x32x32xbf16, #tpu.memory_space<vmem>>, vector<1x32x32xbf16>
    %160 = vector.shape_cast %159 : vector<1x32x32xbf16> to vector<32x32xbf16>
    %cst_111 = arith.constant dense<0.000000e+00> : vector<32x256xf32>
    %161 = tpu.matmul %160, %158, %cst_111 {dimension_numbers = #tpu.dot_dimension_numbers<[1], [0], [0], [1], [0, 0, 1, 1], [], []>} : vector<32x32xbf16>, vector<32x256xbf16>, vector<32x256xf32> -> vector<32x256xf32>
    %c3_112 = arith.constant 3 : index
    %c0_113 = arith.constant 0 : index
    %c0_114 = arith.constant 0 : index
    %162 = vector.load %arg4[%c3_112, %c0_113, %c0_114] : memref<11x32x1xf32, #tpu.memory_space<vmem>>, vector<1x32x1xf32>
    %163 = vector.shape_cast %162 : vector<1x32x1xf32> to vector<32x1xf32>
    %164 = vector.broadcast %163 : vector<32x1xf32> to vector<32x256xf32>
    %165 = arith.addf %161, %164 : vector<32x256xf32>
    %cst_115 = arith.constant 0.000000e+00 : f32
    %166 = vector.broadcast %cst_115 : f32 to vector<32x256xf32>
    %167 = arith.maximumf %165, %166 : vector<32x256xf32>
    %168 = arith.truncf %167 : vector<32x256xf32> to vector<32x256xbf16>
    %c4_116 = arith.constant 4 : index
    %c0_117 = arith.constant 0 : index
    %c0_118 = arith.constant 0 : index
    %169 = vector.load %arg3[%c4_116, %c0_117, %c0_118] : memref<11x32x32xbf16, #tpu.memory_space<vmem>>, vector<1x32x32xbf16>
    %170 = vector.shape_cast %169 : vector<1x32x32xbf16> to vector<32x32xbf16>
    %cst_119 = arith.constant dense<0.000000e+00> : vector<32x256xf32>
    %171 = tpu.matmul %170, %168, %cst_119 {dimension_numbers = #tpu.dot_dimension_numbers<[1], [0], [0], [1], [0, 0, 1, 1], [], []>} : vector<32x32xbf16>, vector<32x256xbf16>, vector<32x256xf32> -> vector<32x256xf32>
    %c4_120 = arith.constant 4 : index
    %c0_121 = arith.constant 0 : index
    %c0_122 = arith.constant 0 : index
    %172 = vector.load %arg4[%c4_120, %c0_121, %c0_122] : memref<11x32x1xf32, #tpu.memory_space<vmem>>, vector<1x32x1xf32>
    %173 = vector.shape_cast %172 : vector<1x32x1xf32> to vector<32x1xf32>
    %174 = vector.broadcast %173 : vector<32x1xf32> to vector<32x256xf32>
    %175 = arith.addf %171, %174 : vector<32x256xf32>
    %176 = arith.truncf %175 : vector<32x256xf32> to vector<32x256xbf16>
    %c5_123 = arith.constant 5 : index
    %c0_124 = arith.constant 0 : index
    %c0_125 = arith.constant 0 : index
    %177 = vector.load %arg3[%c5_123, %c0_124, %c0_125] : memref<11x32x32xbf16, #tpu.memory_space<vmem>>, vector<1x32x32xbf16>
    %178 = vector.shape_cast %177 : vector<1x32x32xbf16> to vector<32x32xbf16>
    %cst_126 = arith.constant dense<0.000000e+00> : vector<32x256xf32>
    %179 = tpu.matmul %178, %176, %cst_126 {dimension_numbers = #tpu.dot_dimension_numbers<[1], [0], [0], [1], [0, 0, 1, 1], [], []>} : vector<32x32xbf16>, vector<32x256xbf16>, vector<32x256xf32> -> vector<32x256xf32>
    %c5_127 = arith.constant 5 : index
    %c0_128 = arith.constant 0 : index
    %c0_129 = arith.constant 0 : index
    %180 = vector.load %arg4[%c5_127, %c0_128, %c0_129] : memref<11x32x1xf32, #tpu.memory_space<vmem>>, vector<1x32x1xf32>
    %181 = vector.shape_cast %180 : vector<1x32x1xf32> to vector<32x1xf32>
    %182 = vector.broadcast %181 : vector<32x1xf32> to vector<32x256xf32>
    %183 = arith.addf %179, %182 : vector<32x256xf32>
    %cst_130 = arith.constant 0.000000e+00 : f32
    %184 = vector.broadcast %cst_130 : f32 to vector<32x256xf32>
    %185 = arith.maximumf %183, %184 : vector<32x256xf32>
    %186 = arith.truncf %185 : vector<32x256xf32> to vector<32x256xbf16>
    %c6_131 = arith.constant 6 : index
    %c0_132 = arith.constant 0 : index
    %c0_133 = arith.constant 0 : index
    %187 = vector.load %arg3[%c6_131, %c0_132, %c0_133] : memref<11x32x32xbf16, #tpu.memory_space<vmem>>, vector<1x32x32xbf16>
    %188 = vector.shape_cast %187 : vector<1x32x32xbf16> to vector<32x32xbf16>
    %cst_134 = arith.constant dense<0.000000e+00> : vector<32x256xf32>
    %189 = tpu.matmul %188, %186, %cst_134 {dimension_numbers = #tpu.dot_dimension_numbers<[1], [0], [0], [1], [0, 0, 1, 1], [], []>} : vector<32x32xbf16>, vector<32x256xbf16>, vector<32x256xf32> -> vector<32x256xf32>
    %c6_135 = arith.constant 6 : index
    %c0_136 = arith.constant 0 : index
    %c0_137 = arith.constant 0 : index
    %190 = vector.load %arg4[%c6_135, %c0_136, %c0_137] : memref<11x32x1xf32, #tpu.memory_space<vmem>>, vector<1x32x1xf32>
    %191 = vector.shape_cast %190 : vector<1x32x1xf32> to vector<32x1xf32>
    %192 = vector.broadcast %191 : vector<32x1xf32> to vector<32x256xf32>
    %193 = arith.addf %189, %192 : vector<32x256xf32>
    %cst_138 = arith.constant 0.000000e+00 : f32
    %194 = vector.broadcast %cst_138 : f32 to vector<32x256xf32>
    %195 = arith.maximumf %193, %194 : vector<32x256xf32>
    %196 = arith.truncf %195 : vector<32x256xf32> to vector<32x256xbf16>
    %c7_139 = arith.constant 7 : index
    %c0_140 = arith.constant 0 : index
    %c0_141 = arith.constant 0 : index
    %197 = vector.load %arg3[%c7_139, %c0_140, %c0_141] : memref<11x32x32xbf16, #tpu.memory_space<vmem>>, vector<1x32x32xbf16>
    %198 = vector.shape_cast %197 : vector<1x32x32xbf16> to vector<32x32xbf16>
    %cst_142 = arith.constant dense<0.000000e+00> : vector<32x256xf32>
    %199 = tpu.matmul %198, %196, %cst_142 {dimension_numbers = #tpu.dot_dimension_numbers<[1], [0], [0], [1], [0, 0, 1, 1], [], []>} : vector<32x32xbf16>, vector<32x256xbf16>, vector<32x256xf32> -> vector<32x256xf32>
    %c7_143 = arith.constant 7 : index
    %c0_144 = arith.constant 0 : index
    %c0_145 = arith.constant 0 : index
    %200 = vector.load %arg4[%c7_143, %c0_144, %c0_145] : memref<11x32x1xf32, #tpu.memory_space<vmem>>, vector<1x32x1xf32>
    %201 = vector.shape_cast %200 : vector<1x32x1xf32> to vector<32x1xf32>
    %202 = vector.broadcast %201 : vector<32x1xf32> to vector<32x256xf32>
    %203 = arith.addf %199, %202 : vector<32x256xf32>
    %204 = arith.addf %129, %203 : vector<32x256xf32>
    %205 = arith.truncf %204 : vector<32x256xf32> to vector<32x256xbf16>
    %c8_146 = arith.constant 8 : index
    %c0_147 = arith.constant 0 : index
    %c0_148 = arith.constant 0 : index
    %206 = vector.load %arg3[%c8_146, %c0_147, %c0_148] : memref<11x32x32xbf16, #tpu.memory_space<vmem>>, vector<1x32x32xbf16>
    %207 = vector.shape_cast %206 : vector<1x32x32xbf16> to vector<32x32xbf16>
    %cst_149 = arith.constant dense<0.000000e+00> : vector<32x256xf32>
    %208 = tpu.matmul %207, %205, %cst_149 {dimension_numbers = #tpu.dot_dimension_numbers<[1], [0], [0], [1], [0, 0, 1, 1], [], []>} : vector<32x32xbf16>, vector<32x256xbf16>, vector<32x256xf32> -> vector<32x256xf32>
    %c8_150 = arith.constant 8 : index
    %c0_151 = arith.constant 0 : index
    %c0_152 = arith.constant 0 : index
    %209 = vector.load %arg4[%c8_150, %c0_151, %c0_152] : memref<11x32x1xf32, #tpu.memory_space<vmem>>, vector<1x32x1xf32>
    %210 = vector.shape_cast %209 : vector<1x32x1xf32> to vector<32x1xf32>
    %211 = vector.broadcast %210 : vector<32x1xf32> to vector<32x256xf32>
    %212 = arith.addf %208, %211 : vector<32x256xf32>
    %cst_153 = arith.constant 0.000000e+00 : f32
    %213 = vector.broadcast %cst_153 : f32 to vector<32x256xf32>
    %214 = arith.maximumf %212, %213 : vector<32x256xf32>
    %215 = arith.truncf %214 : vector<32x256xf32> to vector<32x256xbf16>
    %c9_154 = arith.constant 9 : index
    %c0_155 = arith.constant 0 : index
    %c0_156 = arith.constant 0 : index
    %216 = vector.load %arg3[%c9_154, %c0_155, %c0_156] : memref<11x32x32xbf16, #tpu.memory_space<vmem>>, vector<1x32x32xbf16>
    %217 = vector.shape_cast %216 : vector<1x32x32xbf16> to vector<32x32xbf16>
    %cst_157 = arith.constant dense<0.000000e+00> : vector<32x256xf32>
    %218 = tpu.matmul %217, %215, %cst_157 {dimension_numbers = #tpu.dot_dimension_numbers<[1], [0], [0], [1], [0, 0, 1, 1], [], []>} : vector<32x32xbf16>, vector<32x256xbf16>, vector<32x256xf32> -> vector<32x256xf32>
    %c9_158 = arith.constant 9 : index
    %c0_159 = arith.constant 0 : index
    %c0_160 = arith.constant 0 : index
    %219 = vector.load %arg4[%c9_158, %c0_159, %c0_160] : memref<11x32x1xf32, #tpu.memory_space<vmem>>, vector<1x32x1xf32>
    %220 = vector.shape_cast %219 : vector<1x32x1xf32> to vector<32x1xf32>
    %221 = vector.broadcast %220 : vector<32x1xf32> to vector<32x256xf32>
    %222 = arith.addf %218, %221 : vector<32x256xf32>
    %cst_161 = arith.constant 0.000000e+00 : f32
    %223 = vector.broadcast %cst_161 : f32 to vector<32x256xf32>
    %224 = arith.maximumf %222, %223 : vector<32x256xf32>
    %225 = arith.truncf %224 : vector<32x256xf32> to vector<32x256xbf16>
    %c10_162 = arith.constant 10 : index
    %c0_163 = arith.constant 0 : index
    %c0_164 = arith.constant 0 : index
    %226 = vector.load %arg3[%c10_162, %c0_163, %c0_164] : memref<11x32x32xbf16, #tpu.memory_space<vmem>>, vector<1x32x32xbf16>
    %227 = vector.shape_cast %226 : vector<1x32x32xbf16> to vector<32x32xbf16>
    %cst_165 = arith.constant dense<0.000000e+00> : vector<32x256xf32>
    %228 = tpu.matmul %227, %225, %cst_165 {dimension_numbers = #tpu.dot_dimension_numbers<[1], [0], [0], [1], [0, 0, 1, 1], [], []>} : vector<32x32xbf16>, vector<32x256xbf16>, vector<32x256xf32> -> vector<32x256xf32>
    %c10_166 = arith.constant 10 : index
    %c0_167 = arith.constant 0 : index
    %c0_168 = arith.constant 0 : index
    %229 = vector.load %arg4[%c10_166, %c0_167, %c0_168] : memref<11x32x1xf32, #tpu.memory_space<vmem>>, vector<1x32x1xf32>
    %230 = vector.shape_cast %229 : vector<1x32x1xf32> to vector<32x1xf32>
    %231 = vector.broadcast %230 : vector<32x1xf32> to vector<32x256xf32>
    %232 = arith.addf %228, %231 : vector<32x256xf32>
    %233 = vector.extract_strided_slice %232 {offsets = [0, 0], sizes = [1, 256], strides = [1, 1]} : vector<32x256xf32> to vector<1x256xf32>
    %234 = math.absf %233 : vector<1x256xf32>
    %cst_169 = arith.constant 0.000000e+00 : f32
    %235 = vector.broadcast %cst_169 : f32 to vector<1x256xf32>
    %236 = arith.subf %235, %234 : vector<1x256xf32>
    %237 = math.exp %236 : vector<1x256xf32>
    %238 = math.log1p %237 : vector<1x256xf32>
    %cst_170 = arith.constant 0.000000e+00 : f32
    %239 = vector.broadcast %cst_170 : f32 to vector<1x256xf32>
    %240 = arith.maximumf %233, %239 : vector<1x256xf32>
    %241 = arith.addf %238, %240 : vector<1x256xf32>
    %c0_171 = arith.constant 0 : index
    %c256_172 = arith.constant 256 : index
    %242 = vector.load %arg5[%c0_171, %c256_172] : memref<1x512xf32, #tpu.memory_space<vmem>>, vector<1x256xf32>
    tpu.vector_store %arg5[%c0_171, %c256_172], %241 {strides = array<i32>} : memref<1x512xf32, #tpu.memory_space<vmem>>, vector<1x256xf32>,
    return
  }
  func.func @transform_0(%arg0: i32) -> (i32, i32) {
    %c0_i32 = arith.constant 0 : i32
    %c0_i32_0 = arith.constant 0 : i32
    return %c0_i32, %arg0 : i32, i32
  }
  func.func @transform_1(%arg0: i32) -> (i32, i32) {
    %c0_i32 = arith.constant 0 : i32
    %c0_i32_0 = arith.constant 0 : i32
    %c0_i32_1 = arith.constant 0 : i32
    return %c0_i32, %c0_i32_0 : i32, i32
  }
  func.func @transform_2(%arg0: i32) -> (i32, i32, i32) {
    %c0_i32 = arith.constant 0 : i32
    %c0_i32_0 = arith.constant 0 : i32
    %c0_i32_1 = arith.constant 0 : i32
    %c0_i32_2 = arith.constant 0 : i32
    return %c0_i32, %c0_i32_0, %c0_i32_1 : i32, i32, i32
  }
  func.func @transform_3(%arg0: i32) -> (i32, i32, i32) {
    %c0_i32 = arith.constant 0 : i32
    %c0_i32_0 = arith.constant 0 : i32
    %c0_i32_1 = arith.constant 0 : i32
    %c0_i32_2 = arith.constant 0 : i32
    return %c0_i32, %c0_i32_0, %c0_i32_1 : i32, i32, i32
  }
  func.func @transform_4(%arg0: i32) -> (i32, i32) {
    %c0_i32 = arith.constant 0 : i32
    %c0_i32_0 = arith.constant 0 : i32
    return %c0_i32, %arg0 : i32, i32
  }
}

</mosaic_0001>

<llo_original>
// kernel: tpu_custom_call.1
$region0: #{tpu_custom_call.1}
  #allocation0 [shape = 'u32[]', space=smem, size = 0x4, offset = 0x4, fixed_abs, tag = 'smem constant byte address 0x4 - core index']
  #allocation1 [shape = 'u32[72,128]{1,0:T(1,128)}', space=vmem, size = 0x9000, scoped, tag = 'internal scratch']
  %s0 = inlined_call_operand.vmem [shape: bf16[32,2048], index: 0, kind: input, shape index: {}]
  %s1 = inlined_call_operand.vmem [shape: bf16[96,32], index: 1, kind: input, shape index: {}]
  %s2 = inlined_call_operand.hbm [shape: bf16[11,32,32], index: 2, kind: input, shape index: {}]
  %s3 = inlined_call_operand.vmem [shape: f32[11,32,1], index: 3, kind: input, shape index: {}]
  %s4 = inlined_call_operand.hbm [shape: f32[1,2048], index: 4, kind: output, shape index: {}]
  %s5 = sld [smem:[#allocation0]]
  $region76: #{tpu_custom_call.1} parent=0
    _
  %s7 = ssub.s32 1, %s5
  %s8 = scalar_select 0, %s7, %s5
  $region1: #{tpu_custom_call.1} parent=0
    #allocation2 [shape = 'u8[65536]{0}', space=vmem, size = 0x10000, scoped, tag = 'input window, operand 0']
    #allocation3 [shape = 'u8[90112]{0}', space=vmem, size = 0x16000, scoped, tag = 'input window, operand 2, single buffered']
    #allocation4 [shape = 's32[2]{0}', space=sflag, size = 0x8, scoped, tag = 'scoped memory for tpu_custom_call.1']
    #allocation5 [shape = 's32[2]{0}', space=sflag, size = 0x8, scoped, tag = 'scoped memory for tpu_custom_call.1']
    #allocation6 [shape = 'u8[4096]{0}', space=vmem, size = 0x1000, scoped, tag = 'output window, operand 0']
    %9 = vsyncpa [#allocation4], 0
    %10 = vsyncpa [#allocation5], 0
    %s11 = scalar_lea.sflag [#allocation5], 1
    %12 = vsyncpa %s11, 0
    loop: start=0, step=1, limit=6
    $region2: #{tpu_custom_call.1} parent=1 // loop_pre_header
      _
    $region3: #{tpu_custom_call.1} parent=1 // loop_header
      %s14 = sphi 0, %s18
      %p15 = scmp.ge.s32.totalorder %s14, 6
      %s24 = sphi 0, %s26
      %s27 = sphi 0, %s24
      %s28 = sphi 0, %s27
      %s44 = sphi 0, %s28
      %s48 = sphi 0, %s48
      %s50 = sphi 0, %s48
      %s51 = sphi 0, %s50
      %s65 = sphi 0, %s51
      %s69 = sphi 0, %s69
      %s71 = sphi 0, %s69
      %s72 = sphi 0, %s71
      %s86 = sphi 0, %s72
      %s90 = sphi 0, %s90
      %s92 = sphi 0, %s90
      %s93 = sphi 0, %s92
      %s107 = sphi 0, %s93
      %s113 = sphi 0, %s115
      %s116 = sphi 0, %s113
      %s117 = sphi 0, %s116
      %s133 = sphi 0, %s117
    $region4: #{tpu_custom_call.1} parent=1 // loop_header_branch
      %17 = sbr.rel (%p15) target = $region8
    $region5: #{tpu_custom_call.1} parent=1 // loop_body
      %s19 = ssub.s32 %s14, 1
      %s20 = ssub.s32 %s14, 2
      %s21 = sadd.s32 %s14, 1
      %s22 = ssub.s32 %s14, %s21
      %p23 = scmp.eq.s32.totalorder %s22, 0
      %s25 = sadd.s32 %s24, 1
      %s26 = scalar_select %p23, %s24, %s25
      %p29 = pneg %p23
      %p30 = scmp.eq.s32.totalorder %s14, 3
      %p31 = por %p29, %p30
      %p32 = scmp.ne.s32.totalorder %s24, %s27
      %p33 = scmp.eq.s32.totalorder %s14, 0
      %p34 = por %p32, %p33
      %p35 = scmp.ne.s32.totalorder %s24, %s27
      %p36 = scmp.eq.s32.totalorder %s19, 3
      %p37 = por %p35, %p36
      %p38 = scmp.ne.s32.totalorder %s27, %s28
      %p39 = scmp.eq.s32.totalorder %s19, 0
      %p40 = por %p38, %p39
      %p41 = scmp.ne.s32.totalorder %s27, %s28
      %p42 = scmp.eq.s32.totalorder %s20, 3
      %p43 = por %p41, %p42
      %p45 = scmp.ne.s32.totalorder %s28, %s44
      %p46 = scmp.eq.s32.totalorder %s20, 0
      %p47 = por %p45, %p46
      %s49 = sadd.s32 %s48, 1
      %p52 = scmp.eq.s32.totalorder %s14, 3
      %p53 = scmp.ne.s32.totalorder %s48, %s50
      %p54 = scmp.eq.s32.totalorder %s14, 0
      %p55 = por %p53, %p54
      %p56 = scmp.ne.s32.totalorder %s48, %s50
      %p57 = scmp.eq.s32.totalorder %s19, 3
      %p58 = por %p56, %p57
      %p59 = scmp.ne.s32.totalorder %s50, %s51
      %p60 = scmp.eq.s32.totalorder %s19, 0
      %p61 = por %p59, %p60
      %p62 = scmp.ne.s32.totalorder %s50, %s51
      %p63 = scmp.eq.s32.totalorder %s20, 3
      %p64 = por %p62, %p63
      %p66 = scmp.ne.s32.totalorder %s51, %s65
      %p67 = scmp.eq.s32.totalorder %s20, 0
      %p68 = por %p66, %p67
      %s70 = sadd.s32 %s69, 1
      %p73 = scmp.eq.s32.totalorder %s14, 3
      %p74 = scmp.ne.s32.totalorder %s69, %s71
      %p75 = scmp.eq.s32.totalorder %s14, 0
      %p76 = por %p74, %p75
      %p77 = scmp.ne.s32.totalorder %s69, %s71
      %p78 = scmp.eq.s32.totalorder %s19, 3
      %p79 = por %p77, %p78
      %p80 = scmp.ne.s32.totalorder %s71, %s72
      %p81 = scmp.eq.s32.totalorder %s19, 0
      %p82 = por %p80, %p81
      %p83 = scmp.ne.s32.totalorder %s71, %s72
      %p84 = scmp.eq.s32.totalorder %s20, 3
      %p85 = por %p83, %p84
      %p87 = scmp.ne.s32.totalorder %s72, %s86
      %p88 = scmp.eq.s32.totalorder %s20, 0
      %p89 = por %p87, %p88
      %s91 = sadd.s32 %s90, 1
      %p94 = scmp.eq.s32.totalorder %s14, 3
      %p95 = scmp.ne.s32.totalorder %s90, %s92
      %p96 = scmp.eq.s32.totalorder %s14, 0
      %p97 = por %p95, %p96
      %p98 = scmp.ne.s32.totalorder %s90, %s92
      %p99 = scmp.eq.s32.totalorder %s19, 3
      %p100 = por %p98, %p99
      %p101 = scmp.ne.s32.totalorder %s92, %s93
      %p102 = scmp.eq.s32.totalorder %s19, 0
      %p103 = por %p101, %p102
      %p104 = scmp.ne.s32.totalorder %s92, %s93
      %p105 = scmp.eq.s32.totalorder %s20, 3
      %p106 = por %p104, %p105
      %p108 = scmp.ne.s32.totalorder %s93, %s107
      %p109 = scmp.eq.s32.totalorder %s20, 0
      %p110 = por %p108, %p109
      %s111 = ssub.s32 %s14, %s21
      %p112 = scmp.eq.s32.totalorder %s111, 0
      %s114 = sadd.s32 %s113, 1
      %s115 = scalar_select %p112, %s113, %s114
      %p118 = pneg %p112
      %p119 = scmp.eq.s32.totalorder %s14, 3
      %p120 = por %p118, %p119
      %p121 = scmp.ne.s32.totalorder %s113, %s116
      %p122 = scmp.eq.s32.totalorder %s14, 0
      %p123 = por %p121, %p122
      %p124 = scmp.ne.s32.totalorder %s113, %s116
      %p125 = scmp.eq.s32.totalorder %s19, 3
      %p126 = por %p124, %p125
      %p127 = scmp.ne.s32.totalorder %s116, %s117
      %p128 = scmp.eq.s32.totalorder %s19, 0
      %p129 = por %p127, %p128
      %p130 = scmp.ne.s32.totalorder %s116, %s117
      %p131 = scmp.eq.s32.totalorder %s20, 3
      %p132 = por %p130, %p131
      %p134 = scmp.ne.s32.totalorder %s117, %s133
      %p135 = scmp.eq.s32.totalorder %s20, 0
      %p136 = por %p134, %p135
      %p137 = scmp.le.s32.totalorder 1, %s14
      %p138 = scmp.lt.s32.totalorder %s14, 5
      %p139 = pnand %p137, %p138
      %p140 = pneg %p139
      // Predicated region
      $region9: #{tpu_custom_call.1} parent=5 // pred_check
        _
      $region10: #{tpu_custom_call.1} parent=5 // pred_check_branch
        %142 = sbr.rel (%p139) target = $region12
      $region11: #{tpu_custom_call.1} parent=5 // pred_region
        %s143 = ssub.s32 %s14, 1
        // Predicated region
        $region13: #{tpu_custom_call.1} parent=11 // pred_check
          %p144 = pneg %p61
        $region14: #{tpu_custom_call.1} parent=11 // pred_check_branch
          %146 = sbr.rel (%p144) target = $region16
        $region15: #{tpu_custom_call.1} parent=11 // pred_region
          _
        $region16: #{tpu_custom_call.1} parent=11 // pred_fallthru
          _
        // Predicated region
        $region17: #{tpu_custom_call.1} parent=11 // pred_check
          %p147 = pneg %p82
        $region18: #{tpu_custom_call.1} parent=11 // pred_check_branch
          %149 = sbr.rel (%p147) target = $region20
        $region19: #{tpu_custom_call.1} parent=11 // pred_region
          %151 = vsyncadd [#allocation4], 0
          %s152 = sshll.u32 %s2, 4
          %s153 = int_to_ptr.hbm [resolvable:$true] %s152
          %s154 = sshll.u32 [#allocation3], 4
          %s155 = int_to_ptr.vmem [resolvable:$true] %s154
          %160 = dma.hbm_to_vmem [thread:$0]  %s153, 2816, %s155, [#allocation4], 64, 64, 4
        $region20: #{tpu_custom_call.1} parent=11 // pred_fallthru
          _
        // Predicated region
        $region21: #{tpu_custom_call.1} parent=11 // pred_check
          %p161 = pneg %p103
        $region22: #{tpu_custom_call.1} parent=11 // pred_check_branch
          %163 = sbr.rel (%p161) target = $region24
        $region23: #{tpu_custom_call.1} parent=11 // pred_region
          _
        $region24: #{tpu_custom_call.1} parent=11 // pred_fallthru
          _
      $region12: #{tpu_custom_call.1} parent=5 // pred_fallthru
        _
      %p164 = scmp.lt.s32.totalorder %s14, 4
      // Predicated region
      $region25: #{tpu_custom_call.1} parent=5 // pred_check
        %p165 = pneg %p164
      $region26: #{tpu_custom_call.1} parent=5 // pred_check_branch
        %167 = sbr.rel (%p165) target = $region28
      $region27: #{tpu_custom_call.1} parent=5 // pred_region
        // Predicated region
        $region29: #{tpu_custom_call.1} parent=27 // pred_check
          %p168 = pneg %p34
        $region30: #{tpu_custom_call.1} parent=27 // pred_check_branch
          %170 = sbr.rel (%p168) target = $region32
        $region31: #{tpu_custom_call.1} parent=27 // pred_region
          %s171 = sand.u32 %s24, 1
          %s172 = sand.u32 %s24, 1
          %s173 = smul.addr %s172, 64
          %s174 = scalar_lea.vmem [#allocation2], %s173
          %s175 = smul.u32 4, %s14
          %s176 = smul.addr %s175, 4
          %s177 = scalar_lea.vmem %s0, %s176
          // Predicated region
          $region33: #{tpu_custom_call.1} parent=31 // pred_check
            _
          $region34: #{tpu_custom_call.1} parent=31 // pred_check_branch
            %179 = sbr.rel (0) target = $region36
          $region35: #{tpu_custom_call.1} parent=31 // pred_region
            // Predicated region
            $region37: #{tpu_custom_call.1} parent=35 // pred_check
              _
            $region38: #{tpu_custom_call.1} parent=35 // pred_check_branch
              %181 = sbr.rel (0) target = $region40
            $region39: #{tpu_custom_call.1} parent=35 // pred_region
              loop: start=0, step=1, limit=1
              $region41: #{tpu_custom_call.1} parent=39 // loop_pre_header
                _
              $region42: #{tpu_custom_call.1} parent=39 // loop_header
                %s183 = sphi 0, %s187
                %p184 = scmp.ge.s32.totalorder %s183, 1
                %s188 = sphi %s177, %s177
                %s189 = sphi %s174, %s174
              $region43: #{tpu_custom_call.1} parent=39 // loop_header_branch
                %186 = sbr.rel (%p184) target = $region47
              $region44: #{tpu_custom_call.1} parent=39 // loop_body
                %v190 = vld [vmem:[%s188] sm:$0xff]
                %191 = vst [vmem:[%s189] sm:$0xff] %v190
                %v192 = vld [vmem:[%s188 + $0x8] sm:$0xff]
                %193 = vst [vmem:[%s189 + $0x8] sm:$0xff] %v192
                %v194 = vld [vmem:[%s188 + $0x40] sm:$0xff]
                %195 = vst [vmem:[%s189 + $0x10] sm:$0xff] %v194
                %v196 = vld [vmem:[%s188 + $0x48] sm:$0xff]
                %197 = vst [vmem:[%s189 + $0x18] sm:$0xff] %v196
                %v198 = vld [vmem:[%s188 + $0x80] sm:$0xff]
                %199 = vst [vmem:[%s189 + $0x20] sm:$0xff] %v198
                %v200 = vld [vmem:[%s188 + $0x88] sm:$0xff]
                %201 = vst [vmem:[%s189 + $0x28] sm:$0xff] %v200
                %v202 = vld [vmem:[%s188 + $0xc0] sm:$0xff]
                %203 = vst [vmem:[%s189 + $0x30] sm:$0xff] %v202
                %v204 = vld [vmem:[%s188 + $0xc8] sm:$0xff]
                %205 = vst [vmem:[%s189 + $0x38] sm:$0xff] %v204
              $region45: #{tpu_custom_call.1} parent=39 // loop_footer
                %s187 = sadd.s32 1, %s183
              $region46: #{tpu_custom_call.1} parent=39 // loop_footer_branch
                %182 = sbr.rel target = $region42
              $region47: #{tpu_custom_call.1} parent=39 // loop_exit
                _
            $region40: #{tpu_custom_call.1} parent=35 // pred_fallthru
              _
            // Predicated region
            $region48: #{tpu_custom_call.1} parent=35 // pred_check
              _
            $region49: #{tpu_custom_call.1} parent=35 // pred_check_branch
              %207 = sbr.rel target = $region51
            $region50: #{tpu_custom_call.1} parent=35 // pred_region
              _
            $region51: #{tpu_custom_call.1} parent=35 // pred_fallthru
              _
          $region36: #{tpu_custom_call.1} parent=31 // pred_fallthru
            _
          %208 = vnop
        $region32: #{tpu_custom_call.1} parent=27 // pred_fallthru
          _
      $region28: #{tpu_custom_call.1} parent=5 // pred_fallthru
        _
      %p209 = scmp.le.s32.totalorder 1, %s14
      %p210 = scmp.lt.s32.totalorder %s14, 5
      %p211 = pnand %p209, %p210
      %p212 = pneg %p211
      // Predicated region
      $region52: #{tpu_custom_call.1} parent=5 // pred_check
        _
      $region53: #{tpu_custom_call.1} parent=5 // pred_check_branch
        %214 = sbr.rel (%p211) target = $region55
      $region54: #{tpu_custom_call.1} parent=5 // pred_region
        %s215 = ssub.s32 %s14, 1
        %s216 = sand.u32 %s27, 1
        %s217 = sand.u32 %s27, 1
        %s218 = smul.addr %s217, 64
        %s219 = scalar_lea.vmem [#allocation2], %s218
        // Predicated region
        $region56: #{tpu_custom_call.1} parent=54 // pred_check
          %p220 = pneg %p40
        $region57: #{tpu_custom_call.1} parent=54 // pred_check_branch
          %222 = sbr.rel (%p220) target = $region59
        $region58: #{tpu_custom_call.1} parent=54 // pred_region
          _
        $region59: #{tpu_custom_call.1} parent=54 // pred_fallthru
          _
        // Predicated region
        $region60: #{tpu_custom_call.1} parent=54 // pred_check
          %p223 = pneg %p82
        $region61: #{tpu_custom_call.1} parent=54 // pred_check_branch
          %225 = sbr.rel (%p223) target = $region63
        $region62: #{tpu_custom_call.1} parent=54 // pred_region
          %227 = dma.done [#allocation4], 2816
        $region63: #{tpu_custom_call.1} parent=54 // pred_fallthru
          _
        %s228 = sand.u32 %s27, 1
        %s229 = sand.u32 %s27, 1
        %s230 = smul.addr %s229, 64
        %s231 = scalar_lea.vmem [#allocation2], %s230
        %p232 = pneg %p40
        %p233 = pneg %p37
        %p234 = pneg %p61
        %p235 = pneg %p58
        %p236 = pneg %p82
        %p237 = pneg %p79
        %p238 = pneg %p103
        %p239 = pneg %p100
        %p240 = pneg %p129
        %p241 = pneg %p126
        %s242 = sand.u32 %s116, 1
        %s243 = scalar_lea.sflag [#allocation5], %s242
        %s244 = sand.u32 %s116, 1
        %s245 = smul.addr %s244, 4
        %s246 = scalar_lea.vmem [#allocation6], %s245
        %s247 = smul.u32 4, %s19
        %s248 = smul.u32 4, %s19
        %v250 = vld [vmem:[%s1] sm:$0xf]
        %v251 = vld [vmem:[%s1 + $0x4] sm:$0xf]
        %v252 = vld [vmem:[%s1 + $0x8] sm:$0xf]
        %v253 = vld [vmem:[%s1 + $0xc] sm:$0xf]
        %v254 = vld [vmem:[%s1 + $0x10] sm:$0xf]
        %v255 = vld [vmem:[%s1 + $0x14] sm:$0xf]
        %v256 = vld [vmem:[%s1 + $0x18] sm:$0xf]
        %v257 = vld [vmem:[%s1 + $0x1c] sm:$0xf]
        %v258 = vld [vmem:[%s1 + $0x20] sm:$0xf]
        %v259 = vld [vmem:[%s1 + $0x24] sm:$0xf]
        %v260 = vld [vmem:[%s1 + $0x28] sm:$0xf]
        %v261 = vld [vmem:[%s1 + $0x2c] sm:$0xf]
        %v262 = vld [vmem:[%s219] sm:$0xff]
        %v263 = vld [vmem:[%s219 + $0x10] sm:$0xff]
        %v264 = vld [vmem:[%s219 + $0x20] sm:$0xff]
        %v265 = vld [vmem:[%s219 + $0x30] sm:$0xff]
        %v278 = vunpack.c.l.b16 %v250
        %v279 = vunpack.c.l.b16 %v251
        %v280 = vunpack.c.l.b16 %v252
        %v281 = vunpack.c.l.b16 %v253
        %v282 = vunpack.c.l.b16 %v254
        %v283 = vunpack.c.l.b16 %v255
        %v284 = vunpack.c.l.b16 %v256
        %v285 = vunpack.c.l.b16 %v257
        %v286 = vunpack.c.l.b16 %v258
        %v287 = vunpack.c.l.b16 %v259
        %v288 = vunpack.c.l.b16 %v260
        %v289 = vunpack.c.l.b16 %v261
        %v290 = vpack.c.b16 %v279, %v278
        %v291 = vpack.c.b16 %v281, %v280
        %v292 = vpack.c.b16 %v283, %v282
        %v293 = vpack.c.b16 %v285, %v284
        %v294 = vpack.c.b16 %v287, %v286
        %v295 = vpack.c.b16 %v289, %v288
        %v300 = vunpack.c.l.b16 %v262
        %v301 = vunpack.c.h.b16 %v262
        %v302 = vunpack.c.l.b16 %v263
        %v303 = vunpack.c.h.b16 %v263
        %v304 = vunpack.c.l.b16 %v264
        %v305 = vunpack.c.h.b16 %v264
        %v306 = vunpack.c.l.b16 %v265
        %v307 = vunpack.c.h.b16 %v265
        %v308 = vpack.c.b16 %v302, %v300
        %v309 = vpack.c.b16 %v303, %v301
        %v310 = vpack.c.b16 %v306, %v304
        %v311 = vpack.c.b16 %v307, %v305
        %vm316 = vcmask 261120
        %v318 = vsel %vm316, %v290, 0
        %v321 = vsel %vm316, %v291, 0
        %v324 = vsel %vm316, %v292, 0
        %v327 = vsel %vm316, %v293, 0
        %v330 = vsel %vm316, %v294, 0
        %v333 = vsel %vm316, %v295, 0
        %335 = vmatpush.bf16.msra.mxu0 0
        %336 = vmatpush.bf16.msra.mxu0 0
        %337 = vmatpush.bf16.msra.mxu0 0
        %338 = vmatpush.bf16.msra.mxu0 0
        %339 = vmatpush.bf16.msra.mxu0 0
        %340 = vmatpush.bf16.msra.mxu0 0
        %341 = vmatpush.bf16.msra.mxu0 %v310
        %342 = vmatpush.bf16.msra.mxu0 %v308
        %343 = vmatmul.bf16.gmra.mxu0 %v318
        %v344 = vpop.f32.mrf.mxu0
        %v345 = vadd.f32 0.0, %v344
        %v346 = vpop.f32.mrf.mxu0
        %v347 = vadd.f32 0.0, %v346
        %348 = vmatmul.bf16.gmra.mxu0 %v321
        %v349 = vpop.f32.mrf.mxu0
        %v350 = vadd.f32 0.0, %v349
        %v351 = vpop.f32.mrf.mxu0
        %v352 = vadd.f32 0.0, %v351
        %353 = vmatmul.bf16.gmra.mxu0 %v324
        %v354 = vpop.f32.mrf.mxu0
        %v355 = vadd.f32 0.0, %v354
        %v356 = vpop.f32.mrf.mxu0
        %v357 = vadd.f32 0.0, %v356
        %358 = vmatmul.bf16.gmra.mxu0 %v327
        %v359 = vpop.f32.mrf.mxu0
        %v360 = vadd.f32 0.0, %v359
        %v361 = vpop.f32.mrf.mxu0
        %v362 = vadd.f32 0.0, %v361
        %363 = vmatmul.bf16.gmra.mxu0 %v330
        %v364 = vpop.f32.mrf.mxu0
        %v365 = vadd.f32 0.0, %v364
        %v366 = vpop.f32.mrf.mxu0
        %v367 = vadd.f32 0.0, %v366
        %368 = vmatmul.bf16.gmra.mxu0 %v333
        %v369 = vpop.f32.mrf.mxu0
        %v370 = vadd.f32 0.0, %v369
        %v371 = vpop.f32.mrf.mxu0
        %v372 = vadd.f32 0.0, %v371
        %373 = vdwg.mxu0
        %374 = vmatpush.bf16.msra.mxu0 0
        %375 = vmatpush.bf16.msra.mxu0 0
        %376 = vmatpush.bf16.msra.mxu0 0
        %377 = vmatpush.bf16.msra.mxu0 0
        %378 = vmatpush.bf16.msra.mxu0 0
        %379 = vmatpush.bf16.msra.mxu0 0
        %380 = vmatpush.bf16.msra.mxu0 %v311
        %381 = vmatpush.bf16.msra.mxu0 %v309
        %382 = vmatmul.bf16.gmra.mxu0 %v318
        %v383 = vpop.f32.mrf.mxu0
        %v384 = vadd.f32 0.0, %v383
        %v385 = vpop.f32.mrf.mxu0
        %v386 = vadd.f32 0.0, %v385
        %387 = vmatmul.bf16.gmra.mxu0 %v321
        %v388 = vpop.f32.mrf.mxu0
        %v389 = vadd.f32 0.0, %v388
        %v390 = vpop.f32.mrf.mxu0
        %v391 = vadd.f32 0.0, %v390
        %392 = vmatmul.bf16.gmra.mxu0 %v324
        %v393 = vpop.f32.mrf.mxu0
        %v394 = vadd.f32 0.0, %v393
        %v395 = vpop.f32.mrf.mxu0
        %v396 = vadd.f32 0.0, %v395
        %397 = vmatmul.bf16.gmra.mxu0 %v327
        %v398 = vpop.f32.mrf.mxu0
        %v399 = vadd.f32 0.0, %v398
        %v400 = vpop.f32.mrf.mxu0
        %v401 = vadd.f32 0.0, %v400
        %402 = vmatmul.bf16.gmra.mxu0 %v330
        %v403 = vpop.f32.mrf.mxu0
        %v404 = vadd.f32 0.0, %v403
        %v405 = vpop.f32.mrf.mxu0
        %v406 = vadd.f32 0.0, %v405
        %407 = vmatmul.bf16.gmra.mxu0 %v333
        %v408 = vpop.f32.mrf.mxu0
        %v409 = vadd.f32 0.0, %v408
        %v410 = vpop.f32.mrf.mxu0
        %v411 = vadd.f32 0.0, %v410
        %412 = vdwg.mxu0
        %v413 = vmax.f32 %v355, 0.0
        %v414 = vmax.f32 %v394, 0.0
        %v415 = vmax.f32 %v357, 0.0
        %v416 = vmax.f32 %v396, 0.0
        %v417 = vmax.f32 %v360, 0.0
        %v418 = vmax.f32 %v399, 0.0
        %v419 = vmax.f32 %v362, 0.0
        %v420 = vmax.f32 %v401, 0.0
        %v421 = vpack.c.bf16 %v415, %v413
        %v422 = vpack.c.bf16 %v416, %v414
        %v423 = vpack.c.bf16 %v419, %v417
        %v424 = vpack.c.bf16 %v420, %v418
        %v425 = vld [vmem:[#allocation3] sm:$0xf]
        %v426 = vld [vmem:[#allocation3 + $0x4] sm:$0xf]
        %v427 = vld [vmem:[#allocation3 + $0x8] sm:$0xf]
        %v428 = vld [vmem:[#allocation3 + $0xc] sm:$0xf]
        %v429 = vld [vmem:[%s3] sm:$0xff]
        %v430 = vld [vmem:[%s3 + $0x8] sm:$0xff]
        %v431 = vld [vmem:[%s3 + $0x10] sm:$0xff]
        %v432 = vld [vmem:[%s3 + $0x18] sm:$0xff]
        %434 = vset.pattern.permute.xlu0 0
        %435 = vperm.xlu0 %434, %v429
        %v436 = vpop.permute.xlu0 %435
        %439 = vset.pattern.permute.xlu0 0
        %440 = vperm.xlu0 %439, %v430
        %v441 = vpop.permute.xlu0 %440
        %444 = vset.pattern.permute.xlu0 0
        %445 = vperm.xlu0 %444, %v431
        %v446 = vpop.permute.xlu0 %445
        %449 = vset.pattern.permute.xlu0 0
        %450 = vperm.xlu0 %449, %v432
        %v451 = vpop.permute.xlu0 %450
        %v457 = vunpack.c.l.b16 %v425
        %v458 = vunpack.c.l.b16 %v426
        %v459 = vunpack.c.l.b16 %v427
        %v460 = vunpack.c.l.b16 %v428
        %v461 = vpack.c.b16 %v458, %v457
        %v462 = vpack.c.b16 %v460, %v459
        %v464 = vsel %vm316, %v461, 0
        %v467 = vsel %vm316, %v462, 0
        %469 = vmatpush.bf16.msra.mxu0 0
        %470 = vmatpush.bf16.msra.mxu0 0
        %471 = vmatpush.bf16.msra.mxu0 0
        %472 = vmatpush.bf16.msra.mxu0 0
        %473 = vmatpush.bf16.msra.mxu0 0
        %474 = vmatpush.bf16.msra.mxu0 0
        %475 = vmatpush.bf16.msra.mxu0 %v423
        %476 = vmatpush.bf16.msra.mxu0 %v421
        %477 = vmatmul.bf16.gmra.mxu0 %v464
        %v478 = vpop.f32.mrf.mxu0
        %v479 = vadd.f32 %v436, %v478
        %v480 = vpop.f32.mrf.mxu0
        %v481 = vadd.f32 %v441, %v480
        %482 = vmatmul.bf16.gmra.mxu0 %v467
        %v483 = vpop.f32.mrf.mxu0
        %v484 = vadd.f32 %v446, %v483
        %v485 = vpop.f32.mrf.mxu0
        %v486 = vadd.f32 %v451, %v485
        %487 = vdwg.mxu0
        %488 = vmatpush.bf16.msra.mxu0 0
        %489 = vmatpush.bf16.msra.mxu0 0
        %490 = vmatpush.bf16.msra.mxu0 0
        %491 = vmatpush.bf16.msra.mxu0 0
        %492 = vmatpush.bf16.msra.mxu0 0
        %493 = vmatpush.bf16.msra.mxu0 0
        %494 = vmatpush.bf16.msra.mxu0 %v424
        %495 = vmatpush.bf16.msra.mxu0 %v422
        %496 = vmatmul.bf16.gmra.mxu0 %v464
        %v497 = vpop.f32.mrf.mxu0
        %v498 = vadd.f32 %v436, %v497
        %v499 = vpop.f32.mrf.mxu0
        %v500 = vadd.f32 %v441, %v499
        %501 = vmatmul.bf16.gmra.mxu0 %v467
        %v502 = vpop.f32.mrf.mxu0
        %v503 = vadd.f32 %v446, %v502
        %v504 = vpop.f32.mrf.mxu0
        %v505 = vadd.f32 %v451, %v504
        %506 = vdwg.mxu0
        %v507 = vmax.f32 %v479, 0.0
        %v508 = vmax.f32 %v498, 0.0
        %v509 = vmax.f32 %v481, 0.0
        %v510 = vmax.f32 %v500, 0.0
        %v511 = vmax.f32 %v484, 0.0
        %v512 = vmax.f32 %v503, 0.0
        %v513 = vmax.f32 %v486, 0.0
        %v514 = vmax.f32 %v505, 0.0
        %v515 = vpack.c.bf16 %v509, %v507
        %v516 = vpack.c.bf16 %v510, %v508
        %v517 = vpack.c.bf16 %v513, %v511
        %v518 = vpack.c.bf16 %v514, %v512
        %s519 = scalar_lea.vmem [#allocation3], 16
        %v520 = vld [vmem:[%s519] sm:$0xf]
        %v521 = vld [vmem:[%s519 + $0x4] sm:$0xf]
        %v522 = vld [vmem:[%s519 + $0x8] sm:$0xf]
        %v523 = vld [vmem:[%s519 + $0xc] sm:$0xf]
        %s524 = scalar_lea.vmem %s3, 32
        %v525 = vld [vmem:[%s524] sm:$0xff]
        %v526 = vld [vmem:[%s524 + $0x8] sm:$0xff]
        %v527 = vld [vmem:[%s524 + $0x10] sm:$0xff]
        %v528 = vld [vmem:[%s524 + $0x18] sm:$0xff]
        %530 = vset.pattern.permute.xlu0 0
        %531 = vperm.xlu0 %530, %v525
        %v532 = vpop.permute.xlu0 %531
        %535 = vset.pattern.permute.xlu0 0
        %536 = vperm.xlu0 %535, %v526
        %v537 = vpop.permute.xlu0 %536
        %540 = vset.pattern.permute.xlu0 0
        %541 = vperm.xlu0 %540, %v527
        %v542 = vpop.permute.xlu0 %541
        %545 = vset.pattern.permute.xlu0 0
        %546 = vperm.xlu0 %545, %v528
        %v547 = vpop.permute.xlu0 %546
        %v553 = vunpack.c.l.b16 %v520
        %v554 = vunpack.c.l.b16 %v521
        %v555 = vunpack.c.l.b16 %v522
        %v556 = vunpack.c.l.b16 %v523
        %v557 = vpack.c.b16 %v554, %v553
        %v558 = vpack.c.b16 %v556, %v555
        %v560 = vsel %vm316, %v557, 0
        %v563 = vsel %vm316, %v558, 0
        %565 = vmatpush.bf16.msra.mxu0 0
        %566 = vmatpush.bf16.msra.mxu0 0
        %567 = vmatpush.bf16.msra.mxu0 0
        %568 = vmatpush.bf16.msra.mxu0 0
        %569 = vmatpush.bf16.msra.mxu0 0
        %570 = vmatpush.bf16.msra.mxu0 0
        %571 = vmatpush.bf16.msra.mxu0 %v517
        %572 = vmatpush.bf16.msra.mxu0 %v515
        %573 = vmatmul.bf16.gmra.mxu0 %v560
        %v574 = vpop.f32.mrf.mxu0
        %v575 = vadd.f32 %v532, %v574
        %v576 = vpop.f32.mrf.mxu0
        %v577 = vadd.f32 %v537, %v576
        %578 = vmatmul.bf16.gmra.mxu0 %v563
        %v579 = vpop.f32.mrf.mxu0
        %v580 = vadd.f32 %v542, %v579
        %v581 = vpop.f32.mrf.mxu0
        %v582 = vadd.f32 %v547, %v581
        %583 = vdwg.mxu0
        %584 = vmatpush.bf16.msra.mxu0 0
        %585 = vmatpush.bf16.msra.mxu0 0
        %586 = vmatpush.bf16.msra.mxu0 0
        %587 = vmatpush.bf16.msra.mxu0 0
        %588 = vmatpush.bf16.msra.mxu0 0
        %589 = vmatpush.bf16.msra.mxu0 0
        %590 = vmatpush.bf16.msra.mxu0 %v518
        %591 = vmatpush.bf16.msra.mxu0 %v516
        %592 = vmatmul.bf16.gmra.mxu0 %v560
        %v593 = vpop.f32.mrf.mxu0
        %v594 = vadd.f32 %v532, %v593
        %v595 = vpop.f32.mrf.mxu0
        %v596 = vadd.f32 %v537, %v595
        %597 = vmatmul.bf16.gmra.mxu0 %v563
        %v598 = vpop.f32.mrf.mxu0
        %v599 = vadd.f32 %v542, %v598
        %v600 = vpop.f32.mrf.mxu0
        %v601 = vadd.f32 %v547, %v600
        %602 = vdwg.mxu0
        %v603 = vadd.f32 %v345, %v575
        %v604 = vadd.f32 %v384, %v594
        %v605 = vadd.f32 %v347, %v577
        %v606 = vadd.f32 %v386, %v596
        %v607 = vadd.f32 %v350, %v580
        %v608 = vadd.f32 %v389, %v599
        %v609 = vadd.f32 %v352, %v582
        %v610 = vadd.f32 %v391, %v601
        %v611 = vpack.c.bf16 %v605, %v603
        %v612 = vpack.c.bf16 %v606, %v604
        %v613 = vpack.c.bf16 %v609, %v607
        %v614 = vpack.c.bf16 %v610, %v608
        %s615 = scalar_lea.vmem [#allocation3], 32
        %v616 = vld [vmem:[%s615] sm:$0xf]
        %v617 = vld [vmem:[%s615 + $0x4] sm:$0xf]
        %v618 = vld [vmem:[%s615 + $0x8] sm:$0xf]
        %v619 = vld [vmem:[%s615 + $0xc] sm:$0xf]
        %s620 = scalar_lea.vmem %s3, 64
        %v621 = vld [vmem:[%s620] sm:$0xff]
        %v622 = vld [vmem:[%s620 + $0x8] sm:$0xff]
        %v623 = vld [vmem:[%s620 + $0x10] sm:$0xff]
        %v624 = vld [vmem:[%s620 + $0x18] sm:$0xff]
        %626 = vset.pattern.permute.xlu0 0
        %627 = vperm.xlu0 %626, %v621
        %v628 = vpop.permute.xlu0 %627
        %631 = vset.pattern.permute.xlu0 0
        %632 = vperm.xlu0 %631, %v622
        %v633 = vpop.permute.xlu0 %632
        %636 = vset.pattern.permute.xlu0 0
        %637 = vperm.xlu0 %636, %v623
        %v638 = vpop.permute.xlu0 %637
        %641 = vset.pattern.permute.xlu0 0
        %642 = vperm.xlu0 %641, %v624
        %v643 = vpop.permute.xlu0 %642
        %v649 = vunpack.c.l.b16 %v616
        %v650 = vunpack.c.l.b16 %v617
        %v651 = vunpack.c.l.b16 %v618
        %v652 = vunpack.c.l.b16 %v619
        %v653 = vpack.c.b16 %v650, %v649
        %v654 = vpack.c.b16 %v652, %v651
        %v656 = vsel %vm316, %v653, 0
        %v659 = vsel %vm316, %v654, 0
        %661 = vmatpush.bf16.msra.mxu0 0
        %662 = vmatpush.bf16.msra.mxu0 0
        %663 = vmatpush.bf16.msra.mxu0 0
        %664 = vmatpush.bf16.msra.mxu0 0
        %665 = vmatpush.bf16.msra.mxu0 0
        %666 = vmatpush.bf16.msra.mxu0 0
        %667 = vmatpush.bf16.msra.mxu0 %v613
        %668 = vmatpush.bf16.msra.mxu0 %v611
        %669 = vmatmul.bf16.gmra.mxu0 %v656
        %v670 = vpop.f32.mrf.mxu0
        %v671 = vadd.f32 %v628, %v670
        %v672 = vpop.f32.mrf.mxu0
        %v673 = vadd.f32 %v633, %v672
        %674 = vmatmul.bf16.gmra.mxu0 %v659
        %v675 = vpop.f32.mrf.mxu0
        %v676 = vadd.f32 %v638, %v675
        %v677 = vpop.f32.mrf.mxu0
        %v678 = vadd.f32 %v643, %v677
        %679 = vdwg.mxu0
        %680 = vmatpush.bf16.msra.mxu0 0
        %681 = vmatpush.bf16.msra.mxu0 0
        %682 = vmatpush.bf16.msra.mxu0 0
        %683 = vmatpush.bf16.msra.mxu0 0
        %684 = vmatpush.bf16.msra.mxu0 0
        %685 = vmatpush.bf16.msra.mxu0 0
        %686 = vmatpush.bf16.msra.mxu0 %v614
        %687 = vmatpush.bf16.msra.mxu0 %v612
        %688 = vmatmul.bf16.gmra.mxu0 %v656
        %v689 = vpop.f32.mrf.mxu0
        %v690 = vadd.f32 %v628, %v689
        %v691 = vpop.f32.mrf.mxu0
        %v692 = vadd.f32 %v633, %v691
        %693 = vmatmul.bf16.gmra.mxu0 %v659
        %v694 = vpop.f32.mrf.mxu0
        %v695 = vadd.f32 %v638, %v694
        %v696 = vpop.f32.mrf.mxu0
        %v697 = vadd.f32 %v643, %v696
        %698 = vdwg.mxu0
        %v699 = vmax.f32 %v671, 0.0
        %v700 = vmax.f32 %v690, 0.0
        %v701 = vmax.f32 %v673, 0.0
        %v702 = vmax.f32 %v692, 0.0
        %v703 = vmax.f32 %v676, 0.0
        %v704 = vmax.f32 %v695, 0.0
        %v705 = vmax.f32 %v678, 0.0
        %v706 = vmax.f32 %v697, 0.0
        %v707 = vpack.c.bf16 %v701, %v699
        %v708 = vpack.c.bf16 %v702, %v700
        %v709 = vpack.c.bf16 %v705, %v703
        %v710 = vpack.c.bf16 %v706, %v704
        %s711 = scalar_lea.vmem [#allocation3], 48
        %v712 = vld [vmem:[%s711] sm:$0xf]
        %v713 = vld [vmem:[%s711 + $0x4] sm:$0xf]
        %v714 = vld [vmem:[%s711 + $0x8] sm:$0xf]
        %v715 = vld [vmem:[%s711 + $0xc] sm:$0xf]
        %s716 = scalar_lea.vmem %s3, 96
        %v717 = vld [vmem:[%s716] sm:$0xff]
        %v718 = vld [vmem:[%s716 + $0x8] sm:$0xff]
        %v719 = vld [vmem:[%s716 + $0x10] sm:$0xff]
        %v720 = vld [vmem:[%s716 + $0x18] sm:$0xff]
        %722 = vset.pattern.permute.xlu0 0
        %723 = vperm.xlu0 %722, %v717
        %v724 = vpop.permute.xlu0 %723
        %727 = vset.pattern.permute.xlu0 0
        %728 = vperm.xlu0 %727, %v718
        %v729 = vpop.permute.xlu0 %728
        %732 = vset.pattern.permute.xlu0 0
        %733 = vperm.xlu0 %732, %v719
        %v734 = vpop.permute.xlu0 %733
        %737 = vset.pattern.permute.xlu0 0
        %738 = vperm.xlu0 %737, %v720
        %v739 = vpop.permute.xlu0 %738
        %v745 = vunpack.c.l.b16 %v712
        %v746 = vunpack.c.l.b16 %v713
        %v747 = vunpack.c.l.b16 %v714
        %v748 = vunpack.c.l.b16 %v715
        %v749 = vpack.c.b16 %v746, %v745
        %v750 = vpack.c.b16 %v748, %v747
        %v752 = vsel %vm316, %v749, 0
        %v755 = vsel %vm316, %v750, 0
        %757 = vmatpush.bf16.msra.mxu0 0
        %758 = vmatpush.bf16.msra.mxu0 0
        %759 = vmatpush.bf16.msra.mxu0 0
        %760 = vmatpush.bf16.msra.mxu0 0
        %761 = vmatpush.bf16.msra.mxu0 0
        %762 = vmatpush.bf16.msra.mxu0 0
        %763 = vmatpush.bf16.msra.mxu0 %v709
        %764 = vmatpush.bf16.msra.mxu0 %v707
        %765 = vmatmul.bf16.gmra.mxu0 %v752
        %v766 = vpop.f32.mrf.mxu0
        %v767 = vadd.f32 %v724, %v766
        %v768 = vpop.f32.mrf.mxu0
        %v769 = vadd.f32 %v729, %v768
        %770 = vmatmul.bf16.gmra.mxu0 %v755
        %v771 = vpop.f32.mrf.mxu0
        %v772 = vadd.f32 %v734, %v771
        %v773 = vpop.f32.mrf.mxu0
        %v774 = vadd.f32 %v739, %v773
        %775 = vdwg.mxu0
        %776 = vmatpush.bf16.msra.mxu0 0
        %777 = vmatpush.bf16.msra.mxu0 0
        %778 = vmatpush.bf16.msra.mxu0 0
        %779 = vmatpush.bf16.msra.mxu0 0
        %780 = vmatpush.bf16.msra.mxu0 0
        %781 = vmatpush.bf16.msra.mxu0 0
        %782 = vmatpush.bf16.msra.mxu0 %v710
        %783 = vmatpush.bf16.msra.mxu0 %v708
        %784 = vmatmul.bf16.gmra.mxu0 %v752
        %v785 = vpop.f32.mrf.mxu0
        %v786 = vadd.f32 %v724, %v785
        %v787 = vpop.f32.mrf.mxu0
        %v788 = vadd.f32 %v729, %v787
        %789 = vmatmul.bf16.gmra.mxu0 %v755
        %v790 = vpop.f32.mrf.mxu0
        %v791 = vadd.f32 %v734, %v790
        %v792 = vpop.f32.mrf.mxu0
        %v793 = vadd.f32 %v739, %v792
        %794 = vdwg.mxu0
        %v795 = vmax.f32 %v767, 0.0
        %v796 = vmax.f32 %v786, 0.0
        %v797 = vmax.f32 %v769, 0.0
        %v798 = vmax.f32 %v788, 0.0
        %v799 = vmax.f32 %v772, 0.0
        %v800 = vmax.f32 %v791, 0.0
        %v801 = vmax.f32 %v774, 0.0
        %v802 = vmax.f32 %v793, 0.0
        %v803 = vpack.c.bf16 %v797, %v795
        %v804 = vpack.c.bf16 %v798, %v796
        %v805 = vpack.c.bf16 %v801, %v799
        %v806 = vpack.c.bf16 %v802, %v800
        %s807 = scalar_lea.vmem [#allocation3], 64
        %v808 = vld [vmem:[%s807] sm:$0xf]
        %v809 = vld [vmem:[%s807 + $0x4] sm:$0xf]
        %v810 = vld [vmem:[%s807 + $0x8] sm:$0xf]
        %v811 = vld [vmem:[%s807 + $0xc] sm:$0xf]
        %s812 = scalar_lea.vmem %s3, 128
        %v813 = vld [vmem:[%s812] sm:$0xff]
        %v814 = vld [vmem:[%s812 + $0x8] sm:$0xff]
        %v815 = vld [vmem:[%s812 + $0x10] sm:$0xff]
        %v816 = vld [vmem:[%s812 + $0x18] sm:$0xff]
        %818 = vset.pattern.permute.xlu0 0
        %819 = vperm.xlu0 %818, %v813
        %v820 = vpop.permute.xlu0 %819
        %823 = vset.pattern.permute.xlu0 0
        %824 = vperm.xlu0 %823, %v814
        %v825 = vpop.permute.xlu0 %824
        %828 = vset.pattern.permute.xlu0 0
        %829 = vperm.xlu0 %828, %v815
        %v830 = vpop.permute.xlu0 %829
        %833 = vset.pattern.permute.xlu0 0
        %834 = vperm.xlu0 %833, %v816
        %v835 = vpop.permute.xlu0 %834
        %v841 = vunpack.c.l.b16 %v808
        %v842 = vunpack.c.l.b16 %v809
        %v843 = vunpack.c.l.b16 %v810
        %v844 = vunpack.c.l.b16 %v811
        %v845 = vpack.c.b16 %v842, %v841
        %v846 = vpack.c.b16 %v844, %v843
        %v848 = vsel %vm316, %v845, 0
        %v851 = vsel %vm316, %v846, 0
        %853 = vmatpush.bf16.msra.mxu0 0
        %854 = vmatpush.bf16.msra.mxu0 0
        %855 = vmatpush.bf16.msra.mxu0 0
        %856 = vmatpush.bf16.msra.mxu0 0
        %857 = vmatpush.bf16.msra.mxu0 0
        %858 = vmatpush.bf16.msra.mxu0 0
        %859 = vmatpush.bf16.msra.mxu0 %v805
        %860 = vmatpush.bf16.msra.mxu0 %v803
        %861 = vmatmul.bf16.gmra.mxu0 %v848
        %v862 = vpop.f32.mrf.mxu0
        %v863 = vadd.f32 %v820, %v862
        %v864 = vpop.f32.mrf.mxu0
        %v865 = vadd.f32 %v825, %v864
        %866 = vmatmul.bf16.gmra.mxu0 %v851
        %v867 = vpop.f32.mrf.mxu0
        %v868 = vadd.f32 %v830, %v867
        %v869 = vpop.f32.mrf.mxu0
        %v870 = vadd.f32 %v835, %v869
        %871 = vdwg.mxu0
        %872 = vmatpush.bf16.msra.mxu0 0
        %873 = vmatpush.bf16.msra.mxu0 0
        %874 = vmatpush.bf16.msra.mxu0 0
        %875 = vmatpush.bf16.msra.mxu0 0
        %876 = vmatpush.bf16.msra.mxu0 0
        %877 = vmatpush.bf16.msra.mxu0 0
        %878 = vmatpush.bf16.msra.mxu0 %v806
        %879 = vmatpush.bf16.msra.mxu0 %v804
        %880 = vmatmul.bf16.gmra.mxu0 %v848
        %v881 = vpop.f32.mrf.mxu0
        %v882 = vadd.f32 %v820, %v881
        %v883 = vpop.f32.mrf.mxu0
        %v884 = vadd.f32 %v825, %v883
        %885 = vmatmul.bf16.gmra.mxu0 %v851
        %v886 = vpop.f32.mrf.mxu0
        %v887 = vadd.f32 %v830, %v886
        %v888 = vpop.f32.mrf.mxu0
        %v889 = vadd.f32 %v835, %v888
        %890 = vdwg.mxu0
        %v891 = vpack.c.bf16 %v865, %v863
        %v892 = vpack.c.bf16 %v884, %v882
        %v893 = vpack.c.bf16 %v870, %v868
        %v894 = vpack.c.bf16 %v889, %v887
        %s895 = scalar_lea.vmem [#allocation3], 80
        %v896 = vld [vmem:[%s895] sm:$0xf]
        %v897 = vld [vmem:[%s895 + $0x4] sm:$0xf]
        %v898 = vld [vmem:[%s895 + $0x8] sm:$0xf]
        %v899 = vld [vmem:[%s895 + $0xc] sm:$0xf]
        %s900 = scalar_lea.vmem %s3, 160
        %v901 = vld [vmem:[%s900] sm:$0xff]
        %v902 = vld [vmem:[%s900 + $0x8] sm:$0xff]
        %v903 = vld [vmem:[%s900 + $0x10] sm:$0xff]
        %v904 = vld [vmem:[%s900 + $0x18] sm:$0xff]
        %906 = vset.pattern.permute.xlu0 0
        %907 = vperm.xlu0 %906, %v901
        %v908 = vpop.permute.xlu0 %907
        %911 = vset.pattern.permute.xlu0 0
        %912 = vperm.xlu0 %911, %v902
        %v913 = vpop.permute.xlu0 %912
        %916 = vset.pattern.permute.xlu0 0
        %917 = vperm.xlu0 %916, %v903
        %v918 = vpop.permute.xlu0 %917
        %921 = vset.pattern.permute.xlu0 0
        %922 = vperm.xlu0 %921, %v904
        %v923 = vpop.permute.xlu0 %922
        %v929 = vunpack.c.l.b16 %v896
        %v930 = vunpack.c.l.b16 %v897
        %v931 = vunpack.c.l.b16 %v898
        %v932 = vunpack.c.l.b16 %v899
        %v933 = vpack.c.b16 %v930, %v929
        %v934 = vpack.c.b16 %v932, %v931
        %v936 = vsel %vm316, %v933, 0
        %v939 = vsel %vm316, %v934, 0
        %941 = vmatpush.bf16.msra.mxu0 0
        %942 = vmatpush.bf16.msra.mxu0 0
        %943 = vmatpush.bf16.msra.mxu0 0
        %944 = vmatpush.bf16.msra.mxu0 0
        %945 = vmatpush.bf16.msra.mxu0 0
        %946 = vmatpush.bf16.msra.mxu0 0
        %947 = vmatpush.bf16.msra.mxu0 %v893
        %948 = vmatpush.bf16.msra.mxu0 %v891
        %949 = vmatmul.bf16.gmra.mxu0 %v936
        %v950 = vpop.f32.mrf.mxu0
        %v951 = vadd.f32 %v908, %v950
        %v952 = vpop.f32.mrf.mxu0
        %v953 = vadd.f32 %v913, %v952
        %954 = vmatmul.bf16.gmra.mxu0 %v939
        %v955 = vpop.f32.mrf.mxu0
        %v956 = vadd.f32 %v918, %v955
        %v957 = vpop.f32.mrf.mxu0
        %v958 = vadd.f32 %v923, %v957
        %959 = vdwg.mxu0
        %960 = vmatpush.bf16.msra.mxu0 0
        %961 = vmatpush.bf16.msra.mxu0 0
        %962 = vmatpush.bf16.msra.mxu0 0
        %963 = vmatpush.bf16.msra.mxu0 0
        %964 = vmatpush.bf16.msra.mxu0 0
        %965 = vmatpush.bf16.msra.mxu0 0
        %966 = vmatpush.bf16.msra.mxu0 %v894
        %967 = vmatpush.bf16.msra.mxu0 %v892
        %968 = vmatmul.bf16.gmra.mxu0 %v936
        %v969 = vpop.f32.mrf.mxu0
        %v970 = vadd.f32 %v908, %v969
        %v971 = vpop.f32.mrf.mxu0
        %v972 = vadd.f32 %v913, %v971
        %973 = vmatmul.bf16.gmra.mxu0 %v939
        %v974 = vpop.f32.mrf.mxu0
        %v975 = vadd.f32 %v918, %v974
        %v976 = vpop.f32.mrf.mxu0
        %v977 = vadd.f32 %v923, %v976
        %978 = vdwg.mxu0
        %v979 = vmax.f32 %v951, 0.0
        %v980 = vmax.f32 %v970, 0.0
        %v981 = vmax.f32 %v953, 0.0
        %v982 = vmax.f32 %v972, 0.0
        %v983 = vmax.f32 %v956, 0.0
        %v984 = vmax.f32 %v975, 0.0
        %v985 = vmax.f32 %v958, 0.0
        %v986 = vmax.f32 %v977, 0.0
        %v987 = vpack.c.bf16 %v981, %v979
        %v988 = vpack.c.bf16 %v982, %v980
        %v989 = vpack.c.bf16 %v985, %v983
        %v990 = vpack.c.bf16 %v986, %v984
        %s991 = scalar_lea.vmem [#allocation3], 96
        %v992 = vld [vmem:[%s991] sm:$0xf]
        %v993 = vld [vmem:[%s991 + $0x4] sm:$0xf]
        %v994 = vld [vmem:[%s991 + $0x8] sm:$0xf]
        %v995 = vld [vmem:[%s991 + $0xc] sm:$0xf]
        %s996 = scalar_lea.vmem %s3, 192
        %v997 = vld [vmem:[%s996] sm:$0xff]
        %v998 = vld [vmem:[%s996 + $0x8] sm:$0xff]
        %v999 = vld [vmem:[%s996 + $0x10] sm:$0xff]
        %v1000 = vld [vmem:[%s996 + $0x18] sm:$0xff]
        %1002 = vset.pattern.permute.xlu0 0
        %1003 = vperm.xlu0 %1002, %v997
        %v1004 = vpop.permute.xlu0 %1003
        %1007 = vset.pattern.permute.xlu0 0
        %1008 = vperm.xlu0 %1007, %v998
        %v1009 = vpop.permute.xlu0 %1008
        %1012 = vset.pattern.permute.xlu0 0
        %1013 = vperm.xlu0 %1012, %v999
        %v1014 = vpop.permute.xlu0 %1013
        %1017 = vset.pattern.permute.xlu0 0
        %1018 = vperm.xlu0 %1017, %v1000
        %v1019 = vpop.permute.xlu0 %1018
        %v1025 = vunpack.c.l.b16 %v992
        %v1026 = vunpack.c.l.b16 %v993
        %v1027 = vunpack.c.l.b16 %v994
        %v1028 = vunpack.c.l.b16 %v995
        %v1029 = vpack.c.b16 %v1026, %v1025
        %v1030 = vpack.c.b16 %v1028, %v1027
        %v1032 = vsel %vm316, %v1029, 0
        %v1035 = vsel %vm316, %v1030, 0
        %1037 = vmatpush.bf16.msra.mxu0 0
        %1038 = vmatpush.bf16.msra.mxu0 0
        %1039 = vmatpush.bf16.msra.mxu0 0
        %1040 = vmatpush.bf16.msra.mxu0 0
        %1041 = vmatpush.bf16.msra.mxu0 0
        %1042 = vmatpush.bf16.msra.mxu0 0
        %1043 = vmatpush.bf16.msra.mxu0 %v989
        %1044 = vmatpush.bf16.msra.mxu0 %v987
        %1045 = vmatmul.bf16.gmra.mxu0 %v1032
        %v1046 = vpop.f32.mrf.mxu0
        %v1047 = vadd.f32 %v1004, %v1046
        %v1048 = vpop.f32.mrf.mxu0
        %v1049 = vadd.f32 %v1009, %v1048
        %1050 = vmatmul.bf16.gmra.mxu0 %v1035
        %v1051 = vpop.f32.mrf.mxu0
        %v1052 = vadd.f32 %v1014, %v1051
        %v1053 = vpop.f32.mrf.mxu0
        %v1054 = vadd.f32 %v1019, %v1053
        %1055 = vdwg.mxu0
        %1056 = vmatpush.bf16.msra.mxu0 0
        %1057 = vmatpush.bf16.msra.mxu0 0
        %1058 = vmatpush.bf16.msra.mxu0 0
        %1059 = vmatpush.bf16.msra.mxu0 0
        %1060 = vmatpush.bf16.msra.mxu0 0
        %1061 = vmatpush.bf16.msra.mxu0 0
        %1062 = vmatpush.bf16.msra.mxu0 %v990
        %1063 = vmatpush.bf16.msra.mxu0 %v988
        %1064 = vmatmul.bf16.gmra.mxu0 %v1032
        %v1065 = vpop.f32.mrf.mxu0
        %v1066 = vadd.f32 %v1004, %v1065
        %v1067 = vpop.f32.mrf.mxu0
        %v1068 = vadd.f32 %v1009, %v1067
        %1069 = vmatmul.bf16.gmra.mxu0 %v1035
        %v1070 = vpop.f32.mrf.mxu0
        %v1071 = vadd.f32 %v1014, %v1070
        %v1072 = vpop.f32.mrf.mxu0
        %v1073 = vadd.f32 %v1019, %v1072
        %1074 = vdwg.mxu0
        %v1075 = vmax.f32 %v1047, 0.0
        %v1076 = vmax.f32 %v1066, 0.0
        %v1077 = vmax.f32 %v1049, 0.0
        %v1078 = vmax.f32 %v1068, 0.0
        %v1079 = vmax.f32 %v1052, 0.0
        %v1080 = vmax.f32 %v1071, 0.0
        %v1081 = vmax.f32 %v1054, 0.0
        %v1082 = vmax.f32 %v1073, 0.0
        %v1083 = vpack.c.bf16 %v1077, %v1075
        %v1084 = vpack.c.bf16 %v1078, %v1076
        %v1085 = vpack.c.bf16 %v1081, %v1079
        %v1086 = vpack.c.bf16 %v1082, %v1080
        %s1087 = scalar_lea.vmem [#allocation3], 112
        %v1088 = vld [vmem:[%s1087] sm:$0xf]
        %v1089 = vld [vmem:[%s1087 + $0x4] sm:$0xf]
        %v1090 = vld [vmem:[%s1087 + $0x8] sm:$0xf]
        %v1091 = vld [vmem:[%s1087 + $0xc] sm:$0xf]
        %s1092 = scalar_lea.vmem %s3, 224
        %v1093 = vld [vmem:[%s1092] sm:$0xff]
        %v1094 = vld [vmem:[%s1092 + $0x8] sm:$0xff]
        %v1095 = vld [vmem:[%s1092 + $0x10] sm:$0xff]
        %v1096 = vld [vmem:[%s1092 + $0x18] sm:$0xff]
        %1098 = vset.pattern.permute.xlu0 0
        %1099 = vperm.xlu0 %1098, %v1093
        %v1100 = vpop.permute.xlu0 %1099
        %1103 = vset.pattern.permute.xlu0 0
        %1104 = vperm.xlu0 %1103, %v1094
        %v1105 = vpop.permute.xlu0 %1104
        %1108 = vset.pattern.permute.xlu0 0
        %1109 = vperm.xlu0 %1108, %v1095
        %v1110 = vpop.permute.xlu0 %1109
        %1113 = vset.pattern.permute.xlu0 0
        %1114 = vperm.xlu0 %1113, %v1096
        %v1115 = vpop.permute.xlu0 %1114
        %v1121 = vunpack.c.l.b16 %v1088
        %v1122 = vunpack.c.l.b16 %v1089
        %v1123 = vunpack.c.l.b16 %v1090
        %v1124 = vunpack.c.l.b16 %v1091
        %v1125 = vpack.c.b16 %v1122, %v1121
        %v1126 = vpack.c.b16 %v1124, %v1123
        %v1128 = vsel %vm316, %v1125, 0
        %v1131 = vsel %vm316, %v1126, 0
        %1133 = vmatpush.bf16.msra.mxu0 0
        %1134 = vmatpush.bf16.msra.mxu0 0
        %1135 = vmatpush.bf16.msra.mxu0 0
        %1136 = vmatpush.bf16.msra.mxu0 0
        %1137 = vmatpush.bf16.msra.mxu0 0
        %1138 = vmatpush.bf16.msra.mxu0 0
        %1139 = vmatpush.bf16.msra.mxu0 %v1085
        %1140 = vmatpush.bf16.msra.mxu0 %v1083
        %1141 = vmatmul.bf16.gmra.mxu0 %v1128
        %v1142 = vpop.f32.mrf.mxu0
        %v1143 = vadd.f32 %v1100, %v1142
        %v1144 = vpop.f32.mrf.mxu0
        %v1145 = vadd.f32 %v1105, %v1144
        %1146 = vmatmul.bf16.gmra.mxu0 %v1131
        %v1147 = vpop.f32.mrf.mxu0
        %v1148 = vadd.f32 %v1110, %v1147
        %v1149 = vpop.f32.mrf.mxu0
        %v1150 = vadd.f32 %v1115, %v1149
        %1151 = vdwg.mxu0
        %1152 = vmatpush.bf16.msra.mxu0 0
        %1153 = vmatpush.bf16.msra.mxu0 0
        %1154 = vmatpush.bf16.msra.mxu0 0
        %1155 = vmatpush.bf16.msra.mxu0 0
        %1156 = vmatpush.bf16.msra.mxu0 0
        %1157 = vmatpush.bf16.msra.mxu0 0
        %1158 = vmatpush.bf16.msra.mxu0 %v1086
        %1159 = vmatpush.bf16.msra.mxu0 %v1084
        %1160 = vmatmul.bf16.gmra.mxu0 %v1128
        %v1161 = vpop.f32.mrf.mxu0
        %v1162 = vadd.f32 %v1100, %v1161
        %v1163 = vpop.f32.mrf.mxu0
        %v1164 = vadd.f32 %v1105, %v1163
        %1165 = vmatmul.bf16.gmra.mxu0 %v1131
        %v1166 = vpop.f32.mrf.mxu0
        %v1167 = vadd.f32 %v1110, %v1166
        %v1168 = vpop.f32.mrf.mxu0
        %v1169 = vadd.f32 %v1115, %v1168
        %1170 = vdwg.mxu0
        %v1171 = vadd.f32 %v365, %v1143
        %v1172 = vadd.f32 %v404, %v1162
        %v1173 = vadd.f32 %v367, %v1145
        %v1174 = vadd.f32 %v406, %v1164
        %v1175 = vadd.f32 %v370, %v1148
        %v1176 = vadd.f32 %v409, %v1167
        %v1177 = vadd.f32 %v372, %v1150
        %v1178 = vadd.f32 %v411, %v1169
        %v1179 = vpack.c.bf16 %v1173, %v1171
        %v1180 = vpack.c.bf16 %v1174, %v1172
        %v1181 = vpack.c.bf16 %v1177, %v1175
        %v1182 = vpack.c.bf16 %v1178, %v1176
        %s1183 = scalar_lea.vmem [#allocation3], 128
        %v1184 = vld [vmem:[%s1183] sm:$0xf]
        %v1185 = vld [vmem:[%s1183 + $0x4] sm:$0xf]
        %v1186 = vld [vmem:[%s1183 + $0x8] sm:$0xf]
        %v1187 = vld [vmem:[%s1183 + $0xc] sm:$0xf]
        %s1188 = scalar_lea.vmem %s3, 256
        %v1189 = vld [vmem:[%s1188] sm:$0xff]
        %v1190 = vld [vmem:[%s1188 + $0x8] sm:$0xff]
        %v1191 = vld [vmem:[%s1188 + $0x10] sm:$0xff]
        %v1192 = vld [vmem:[%s1188 + $0x18] sm:$0xff]
        %1194 = vset.pattern.permute.xlu0 0
        %1195 = vperm.xlu0 %1194, %v1189
        %v1196 = vpop.permute.xlu0 %1195
        %1199 = vset.pattern.permute.xlu0 0
        %1200 = vperm.xlu0 %1199, %v1190
        %v1201 = vpop.permute.xlu0 %1200
        %1204 = vset.pattern.permute.xlu0 0
        %1205 = vperm.xlu0 %1204, %v1191
        %v1206 = vpop.permute.xlu0 %1205
        %1209 = vset.pattern.permute.xlu0 0
        %1210 = vperm.xlu0 %1209, %v1192
        %v1211 = vpop.permute.xlu0 %1210
        %v1217 = vunpack.c.l.b16 %v1184
        %v1218 = vunpack.c.l.b16 %v1185
        %v1219 = vunpack.c.l.b16 %v1186
        %v1220 = vunpack.c.l.b16 %v1187
        %v1221 = vpack.c.b16 %v1218, %v1217
        %v1222 = vpack.c.b16 %v1220, %v1219
        %v1224 = vsel %vm316, %v1221, 0
        %v1227 = vsel %vm316, %v1222, 0
        %1229 = vmatpush.bf16.msra.mxu0 0
        %1230 = vmatpush.bf16.msra.mxu0 0
        %1231 = vmatpush.bf16.msra.mxu0 0
        %1232 = vmatpush.bf16.msra.mxu0 0
        %1233 = vmatpush.bf16.msra.mxu0 0
        %1234 = vmatpush.bf16.msra.mxu0 0
        %1235 = vmatpush.bf16.msra.mxu0 %v1181
        %1236 = vmatpush.bf16.msra.mxu0 %v1179
        %1237 = vmatmul.bf16.gmra.mxu0 %v1224
        %v1238 = vpop.f32.mrf.mxu0
        %v1239 = vadd.f32 %v1196, %v1238
        %v1240 = vpop.f32.mrf.mxu0
        %v1241 = vadd.f32 %v1201, %v1240
        %1242 = vmatmul.bf16.gmra.mxu0 %v1227
        %v1243 = vpop.f32.mrf.mxu0
        %v1244 = vadd.f32 %v1206, %v1243
        %v1245 = vpop.f32.mrf.mxu0
        %v1246 = vadd.f32 %v1211, %v1245
        %1247 = vdwg.mxu0
        %1248 = vmatpush.bf16.msra.mxu0 0
        %1249 = vmatpush.bf16.msra.mxu0 0
        %1250 = vmatpush.bf16.msra.mxu0 0
        %1251 = vmatpush.bf16.msra.mxu0 0
        %1252 = vmatpush.bf16.msra.mxu0 0
        %1253 = vmatpush.bf16.msra.mxu0 0
        %1254 = vmatpush.bf16.msra.mxu0 %v1182
        %1255 = vmatpush.bf16.msra.mxu0 %v1180
        %1256 = vmatmul.bf16.gmra.mxu0 %v1224
        %v1257 = vpop.f32.mrf.mxu0
        %v1258 = vadd.f32 %v1196, %v1257
        %v1259 = vpop.f32.mrf.mxu0
        %v1260 = vadd.f32 %v1201, %v1259
        %1261 = vmatmul.bf16.gmra.mxu0 %v1227
        %v1262 = vpop.f32.mrf.mxu0
        %v1263 = vadd.f32 %v1206, %v1262
        %v1264 = vpop.f32.mrf.mxu0
        %v1265 = vadd.f32 %v1211, %v1264
        %1266 = vdwg.mxu0
        %v1267 = vmax.f32 %v1239, 0.0
        %v1268 = vmax.f32 %v1258, 0.0
        %v1269 = vmax.f32 %v1241, 0.0
        %v1270 = vmax.f32 %v1260, 0.0
        %v1271 = vmax.f32 %v1244, 0.0
        %v1272 = vmax.f32 %v1263, 0.0
        %v1273 = vmax.f32 %v1246, 0.0
        %v1274 = vmax.f32 %v1265, 0.0
        %v1275 = vpack.c.bf16 %v1269, %v1267
        %v1276 = vpack.c.bf16 %v1270, %v1268
        %v1277 = vpack.c.bf16 %v1273, %v1271
        %v1278 = vpack.c.bf16 %v1274, %v1272
        %s1279 = scalar_lea.vmem [#allocation3], 144
        %v1280 = vld [vmem:[%s1279] sm:$0xf]
        %v1281 = vld [vmem:[%s1279 + $0x4] sm:$0xf]
        %v1282 = vld [vmem:[%s1279 + $0x8] sm:$0xf]
        %v1283 = vld [vmem:[%s1279 + $0xc] sm:$0xf]
        %s1284 = scalar_lea.vmem %s3, 288
        %v1285 = vld [vmem:[%s1284] sm:$0xff]
        %v1286 = vld [vmem:[%s1284 + $0x8] sm:$0xff]
        %v1287 = vld [vmem:[%s1284 + $0x10] sm:$0xff]
        %v1288 = vld [vmem:[%s1284 + $0x18] sm:$0xff]
        %1290 = vset.pattern.permute.xlu0 0
        %1291 = vperm.xlu0 %1290, %v1285
        %v1292 = vpop.permute.xlu0 %1291
        %1295 = vset.pattern.permute.xlu0 0
        %1296 = vperm.xlu0 %1295, %v1286
        %v1297 = vpop.permute.xlu0 %1296
        %1300 = vset.pattern.permute.xlu0 0
        %1301 = vperm.xlu0 %1300, %v1287
        %v1302 = vpop.permute.xlu0 %1301
        %1305 = vset.pattern.permute.xlu0 0
        %1306 = vperm.xlu0 %1305, %v1288
        %v1307 = vpop.permute.xlu0 %1306
        %v1313 = vunpack.c.l.b16 %v1280
        %v1314 = vunpack.c.l.b16 %v1281
        %v1315 = vunpack.c.l.b16 %v1282
        %v1316 = vunpack.c.l.b16 %v1283
        %v1317 = vpack.c.b16 %v1314, %v1313
        %v1318 = vpack.c.b16 %v1316, %v1315
        %v1320 = vsel %vm316, %v1317, 0
        %v1323 = vsel %vm316, %v1318, 0
        %1325 = vmatpush.bf16.msra.mxu0 0
        %1326 = vmatpush.bf16.msra.mxu0 0
        %1327 = vmatpush.bf16.msra.mxu0 0
        %1328 = vmatpush.bf16.msra.mxu0 0
        %1329 = vmatpush.bf16.msra.mxu0 0
        %1330 = vmatpush.bf16.msra.mxu0 0
        %1331 = vmatpush.bf16.msra.mxu0 %v1277
        %1332 = vmatpush.bf16.msra.mxu0 %v1275
        %1333 = vmatmul.bf16.gmra.mxu0 %v1320
        %v1334 = vpop.f32.mrf.mxu0
        %v1335 = vadd.f32 %v1292, %v1334
        %v1336 = vpop.f32.mrf.mxu0
        %v1337 = vadd.f32 %v1297, %v1336
        %1338 = vmatmul.bf16.gmra.mxu0 %v1323
        %v1339 = vpop.f32.mrf.mxu0
        %v1340 = vadd.f32 %v1302, %v1339
        %v1341 = vpop.f32.mrf.mxu0
        %v1342 = vadd.f32 %v1307, %v1341
        %1343 = vdwg.mxu0
        %1344 = vmatpush.bf16.msra.mxu0 0
        %1345 = vmatpush.bf16.msra.mxu0 0
        %1346 = vmatpush.bf16.msra.mxu0 0
        %1347 = vmatpush.bf16.msra.mxu0 0
        %1348 = vmatpush.bf16.msra.mxu0 0
        %1349 = vmatpush.bf16.msra.mxu0 0
        %1350 = vmatpush.bf16.msra.mxu0 %v1278
        %1351 = vmatpush.bf16.msra.mxu0 %v1276
        %1352 = vmatmul.bf16.gmra.mxu0 %v1320
        %v1353 = vpop.f32.mrf.mxu0
        %v1354 = vadd.f32 %v1292, %v1353
        %v1355 = vpop.f32.mrf.mxu0
        %v1356 = vadd.f32 %v1297, %v1355
        %1357 = vmatmul.bf16.gmra.mxu0 %v1323
        %v1358 = vpop.f32.mrf.mxu0
        %v1359 = vadd.f32 %v1302, %v1358
        %v1360 = vpop.f32.mrf.mxu0
        %v1361 = vadd.f32 %v1307, %v1360
        %1362 = vdwg.mxu0
        %v1363 = vmax.f32 %v1335, 0.0
        %v1364 = vmax.f32 %v1354, 0.0
        %v1365 = vmax.f32 %v1337, 0.0
        %v1366 = vmax.f32 %v1356, 0.0
        %v1367 = vmax.f32 %v1340, 0.0
        %v1368 = vmax.f32 %v1359, 0.0
        %v1369 = vmax.f32 %v1342, 0.0
        %v1370 = vmax.f32 %v1361, 0.0
        %v1371 = vpack.c.bf16 %v1365, %v1363
        %v1372 = vpack.c.bf16 %v1366, %v1364
        %v1373 = vpack.c.bf16 %v1369, %v1367
        %v1374 = vpack.c.bf16 %v1370, %v1368
        %s1375 = scalar_lea.vmem [#allocation3], 160
        %v1376 = vld [vmem:[%s1375] sm:$0xf]
        %v1377 = vld [vmem:[%s1375 + $0x4] sm:$0xf]
        %v1378 = vld [vmem:[%s1375 + $0x8] sm:$0xf]
        %v1379 = vld [vmem:[%s1375 + $0xc] sm:$0xf]
        %s1380 = scalar_lea.vmem %s3, 320
        %v1381 = vld [vmem:[%s1380] sm:$0xff]
        %v1382 = vld [vmem:[%s1380 + $0x8] sm:$0xff]
        %v1383 = vld [vmem:[%s1380 + $0x10] sm:$0xff]
        %v1384 = vld [vmem:[%s1380 + $0x18] sm:$0xff]
        %1386 = vset.pattern.permute.xlu0 0
        %1387 = vperm.xlu0 %1386, %v1381
        %v1388 = vpop.permute.xlu0 %1387
        %1391 = vset.pattern.permute.xlu0 0
        %1392 = vperm.xlu0 %1391, %v1382
        %v1393 = vpop.permute.xlu0 %1392
        %1395 = vset.pattern.permute.xlu0 0
        %1396 = vperm.xlu0 %1395, %v1383
        %v1397 = vpop.permute.xlu0 %1396
        %1399 = vset.pattern.permute.xlu0 0
        %1400 = vperm.xlu0 %1399, %v1384
        %v1401 = vpop.permute.xlu0 %1400
        %v1406 = vunpack.c.l.b16 %v1376
        %v1407 = vunpack.c.l.b16 %v1377
        %v1408 = vunpack.c.l.b16 %v1378
        %v1409 = vunpack.c.l.b16 %v1379
        %v1410 = vpack.c.b16 %v1407, %v1406
        %v1411 = vpack.c.b16 %v1409, %v1408
        %v1413 = vsel %vm316, %v1410, 0
        %v1416 = vsel %vm316, %v1411, 0
        %1418 = vmatpush.bf16.msra.mxu0 0
        %1419 = vmatpush.bf16.msra.mxu0 0
        %1420 = vmatpush.bf16.msra.mxu0 0
        %1421 = vmatpush.bf16.msra.mxu0 0
        %1422 = vmatpush.bf16.msra.mxu0 0
        %1423 = vmatpush.bf16.msra.mxu0 0
        %1424 = vmatpush.bf16.msra.mxu0 %v1373
        %1425 = vmatpush.bf16.msra.mxu0 %v1371
        %1426 = vmatmul.bf16.gmra.mxu0 %v1413
        %v1427 = vpop.f32.mrf.mxu0
        %v1428 = vadd.f32 %v1388, %v1427
        %v1429 = vpop.f32.mrf.mxu0
        %1430 = vmatmul.bf16.gmra.mxu0 %v1416
        %v1431 = vpop.f32.mrf.mxu0
        %v1432 = vpop.f32.mrf.mxu0
        %1433 = vdwg.mxu0
        %1434 = vmatpush.bf16.msra.mxu0 0
        %1435 = vmatpush.bf16.msra.mxu0 0
        %1436 = vmatpush.bf16.msra.mxu0 0
        %1437 = vmatpush.bf16.msra.mxu0 0
        %1438 = vmatpush.bf16.msra.mxu0 0
        %1439 = vmatpush.bf16.msra.mxu0 0
        %1440 = vmatpush.bf16.msra.mxu0 %v1374
        %1441 = vmatpush.bf16.msra.mxu0 %v1372
        %1442 = vmatmul.bf16.gmra.mxu0 %v1413
        %v1443 = vpop.f32.mrf.mxu0
        %v1444 = vadd.f32 %v1388, %v1443
        %v1445 = vpop.f32.mrf.mxu0
        %1446 = vmatmul.bf16.gmra.mxu0 %v1416
        %v1447 = vpop.f32.mrf.mxu0
        %v1448 = vpop.f32.mrf.mxu0
        %1449 = vdwg.mxu0
        %v1450 = vand.u32 2147483647, %v1428
        %v1451 = vand.u32 2147483647, %v1444
        %v1452 = vsub.f32 0.0, %v1450
        %v1453 = vsub.f32 0.0, %v1451
        %v1454 = vmul.f32 %v1452, 1.442695
        %v1455 = vpow.pop %v1454
        %v1456 = vmul.f32 %v1453, 1.442695
        %v1457 = vpow.pop %v1456
        %v1458 = vadd.f32 %v1455, 1.0
        %v1459 = vlog2.pop %v1458
        %v1460 = vmul.f32 %v1459, 0.6931472
        %v1461 = vmul.f32 -0.5, %v1455
        %v1462 = vadd.f32 %v1461, 1.0
        %v1463 = vmul.f32 %v1462, %v1455
        %v1464 = vand.u32 2147483647, %v1455
        %vm1465 = vcmp.lt.f32.partialorder %v1464, 0.0004427343
        %v1466 = vsel %vm1465, %v1463, %v1460
        %v1467 = vadd.f32 %v1457, 1.0
        %v1468 = vlog2.pop %v1467
        %v1469 = vmul.f32 %v1468, 0.6931472
        %v1470 = vmul.f32 -0.5, %v1457
        %v1471 = vadd.f32 %v1470, 1.0
        %v1472 = vmul.f32 %v1471, %v1457
        %v1473 = vand.u32 2147483647, %v1457
        %vm1474 = vcmp.lt.f32.partialorder %v1473, 0.0004427343
        %v1475 = vsel %vm1474, %v1472, %v1469
        %v1476 = vmax.f32 %v1428, 0.0
        %v1477 = vmax.f32 %v1444, 0.0
        %v1478 = vadd.f32 %v1466, %v1476
        %v1479 = vadd.f32 %v1475, %v1477
        %v1482 = vrot.slane %v1479, 7
        %vm1483 = vcmask 1040384
        %v1484 = vsel %vm1483, %v1478, %v1482
        %v1486 = vlaneseq
        %vm1487 = vcmp.ge.s32.totalorder %v1486, 0
        %vm1488 = vcmp.lt.s32.totalorder %v1486, 256
        %vm1489 = vmand %vm1487, %vm1488
        %1490 = vst.msk [vmem:[%s246] sm:$0x3] %vm1489, %v1484
        %v1491 = vld [vmem:[%s219 + $0x8] sm:$0xff]
        %v1492 = vld [vmem:[%s219 + $0x18] sm:$0xff]
        %v1493 = vld [vmem:[%s219 + $0x28] sm:$0xff]
        %v1494 = vld [vmem:[%s219 + $0x38] sm:$0xff]
        %v1499 = vunpack.c.l.b16 %v1491
        %v1500 = vunpack.c.h.b16 %v1491
        %v1501 = vunpack.c.l.b16 %v1492
        %v1502 = vunpack.c.h.b16 %v1492
        %v1503 = vunpack.c.l.b16 %v1493
        %v1504 = vunpack.c.h.b16 %v1493
        %v1505 = vunpack.c.l.b16 %v1494
        %v1506 = vunpack.c.h.b16 %v1494
        %v1507 = vpack.c.b16 %v1501, %v1499
        %v1508 = vpack.c.b16 %v1502, %v1500
        %v1509 = vpack.c.b16 %v1505, %v1503
        %v1510 = vpack.c.b16 %v1506, %v1504
        %1515 = vmatpush.bf16.msra.mxu0 0
        %1516 = vmatpush.bf16.msra.mxu0 0
        %1517 = vmatpush.bf16.msra.mxu0 0
        %1518 = vmatpush.bf16.msra.mxu0 0
        %1519 = vmatpush.bf16.msra.mxu0 0
        %1520 = vmatpush.bf16.msra.mxu0 0
        %1521 = vmatpush.bf16.msra.mxu0 %v1509
        %1522 = vmatpush.bf16.msra.mxu0 %v1507
        %1523 = vmatmul.bf16.gmra.mxu0 %v318
        %v1524 = vpop.f32.mrf.mxu0
        %v1525 = vadd.f32 0.0, %v1524
        %v1526 = vpop.f32.mrf.mxu0
        %v1527 = vadd.f32 0.0, %v1526
        %1528 = vmatmul.bf16.gmra.mxu0 %v321
        %v1529 = vpop.f32.mrf.mxu0
        %v1530 = vadd.f32 0.0, %v1529
        %v1531 = vpop.f32.mrf.mxu0
        %v1532 = vadd.f32 0.0, %v1531
        %1533 = vmatmul.bf16.gmra.mxu0 %v324
        %v1534 = vpop.f32.mrf.mxu0
        %v1535 = vadd.f32 0.0, %v1534
        %v1536 = vpop.f32.mrf.mxu0
        %v1537 = vadd.f32 0.0, %v1536
        %1538 = vmatmul.bf16.gmra.mxu0 %v327
        %v1539 = vpop.f32.mrf.mxu0
        %v1540 = vadd.f32 0.0, %v1539
        %v1541 = vpop.f32.mrf.mxu0
        %v1542 = vadd.f32 0.0, %v1541
        %1543 = vmatmul.bf16.gmra.mxu0 %v330
        %v1544 = vpop.f32.mrf.mxu0
        %v1545 = vadd.f32 0.0, %v1544
        %v1546 = vpop.f32.mrf.mxu0
        %v1547 = vadd.f32 0.0, %v1546
        %1548 = vmatmul.bf16.gmra.mxu0 %v333
        %v1549 = vpop.f32.mrf.mxu0
        %v1550 = vadd.f32 0.0, %v1549
        %v1551 = vpop.f32.mrf.mxu0
        %v1552 = vadd.f32 0.0, %v1551
        %1553 = vdwg.mxu0
        %1554 = vmatpush.bf16.msra.mxu0 0
        %1555 = vmatpush.bf16.msra.mxu0 0
        %1556 = vmatpush.bf16.msra.mxu0 0
        %1557 = vmatpush.bf16.msra.mxu0 0
        %1558 = vmatpush.bf16.msra.mxu0 0
        %1559 = vmatpush.bf16.msra.mxu0 0
        %1560 = vmatpush.bf16.msra.mxu0 %v1510
        %1561 = vmatpush.bf16.msra.mxu0 %v1508
        %1562 = vmatmul.bf16.gmra.mxu0 %v318
        %v1563 = vpop.f32.mrf.mxu0
        %v1564 = vadd.f32 0.0, %v1563
        %v1565 = vpop.f32.mrf.mxu0
        %v1566 = vadd.f32 0.0, %v1565
        %1567 = vmatmul.bf16.gmra.mxu0 %v321
        %v1568 = vpop.f32.mrf.mxu0
        %v1569 = vadd.f32 0.0, %v1568
        %v1570 = vpop.f32.mrf.mxu0
        %v1571 = vadd.f32 0.0, %v1570
        %1572 = vmatmul.bf16.gmra.mxu0 %v324
        %v1573 = vpop.f32.mrf.mxu0
        %v1574 = vadd.f32 0.0, %v1573
        %v1575 = vpop.f32.mrf.mxu0
        %v1576 = vadd.f32 0.0, %v1575
        %1577 = vmatmul.bf16.gmra.mxu0 %v327
        %v1578 = vpop.f32.mrf.mxu0
        %v1579 = vadd.f32 0.0, %v1578
        %v1580 = vpop.f32.mrf.mxu0
        %v1581 = vadd.f32 0.0, %v1580
        %1582 = vmatmul.bf16.gmra.mxu0 %v330
        %v1583 = vpop.f32.mrf.mxu0
        %v1584 = vadd.f32 0.0, %v1583
        %v1585 = vpop.f32.mrf.mxu0
        %v1586 = vadd.f32 0.0, %v1585
        %1587 = vmatmul.bf16.gmra.mxu0 %v333
        %v1588 = vpop.f32.mrf.mxu0
        %v1589 = vadd.f32 0.0, %v1588
        %v1590 = vpop.f32.mrf.mxu0
        %v1591 = vadd.f32 0.0, %v1590
        %1592 = vdwg.mxu0
        %v1593 = vmax.f32 %v1535, 0.0
        %v1594 = vmax.f32 %v1574, 0.0
        %v1595 = vmax.f32 %v1537, 0.0
        %v1596 = vmax.f32 %v1576, 0.0
        %v1597 = vmax.f32 %v1540, 0.0
        %v1598 = vmax.f32 %v1579, 0.0
        %v1599 = vmax.f32 %v1542, 0.0
        %v1600 = vmax.f32 %v1581, 0.0
        %v1601 = vpack.c.bf16 %v1595, %v1593
        %v1602 = vpack.c.bf16 %v1596, %v1594
        %v1603 = vpack.c.bf16 %v1599, %v1597
        %v1604 = vpack.c.bf16 %v1600, %v1598
        %v1605 = vld [vmem:[#allocation3] sm:$0xf]
        %v1606 = vld [vmem:[#allocation3 + $0x4] sm:$0xf]
        %v1607 = vld [vmem:[#allocation3 + $0x8] sm:$0xf]
        %v1608 = vld [vmem:[#allocation3 + $0xc] sm:$0xf]
        %v1609 = vld [vmem:[%s3] sm:$0xff]
        %v1610 = vld [vmem:[%s3 + $0x8] sm:$0xff]
        %v1611 = vld [vmem:[%s3 + $0x10] sm:$0xff]
        %v1612 = vld [vmem:[%s3 + $0x18] sm:$0xff]
        %1614 = vset.pattern.permute.xlu0 0
        %1615 = vperm.xlu0 %1614, %v1609
        %v1616 = vpop.permute.xlu0 %1615
        %1619 = vset.pattern.permute.xlu0 0
        %1620 = vperm.xlu0 %1619, %v1610
        %v1621 = vpop.permute.xlu0 %1620
        %1624 = vset.pattern.permute.xlu0 0
        %1625 = vperm.xlu0 %1624, %v1611
        %v1626 = vpop.permute.xlu0 %1625
        %1629 = vset.pattern.permute.xlu0 0
        %1630 = vperm.xlu0 %1629, %v1612
        %v1631 = vpop.permute.xlu0 %1630
        %v1637 = vunpack.c.l.b16 %v1605
        %v1638 = vunpack.c.l.b16 %v1606
        %v1639 = vunpack.c.l.b16 %v1607
        %v1640 = vunpack.c.l.b16 %v1608
        %v1641 = vpack.c.b16 %v1638, %v1637
        %v1642 = vpack.c.b16 %v1640, %v1639
        %v1644 = vsel %vm316, %v1641, 0
        %v1647 = vsel %vm316, %v1642, 0
        %1649 = vmatpush.bf16.msra.mxu0 0
        %1650 = vmatpush.bf16.msra.mxu0 0
        %1651 = vmatpush.bf16.msra.mxu0 0
        %1652 = vmatpush.bf16.msra.mxu0 0
        %1653 = vmatpush.bf16.msra.mxu0 0
        %1654 = vmatpush.bf16.msra.mxu0 0
        %1655 = vmatpush.bf16.msra.mxu0 %v1603
        %1656 = vmatpush.bf16.msra.mxu0 %v1601
        %1657 = vmatmul.bf16.gmra.mxu0 %v1644
        %v1658 = vpop.f32.mrf.mxu0
        %v1659 = vadd.f32 %v1616, %v1658
        %v1660 = vpop.f32.mrf.mxu0
        %v1661 = vadd.f32 %v1621, %v1660
        %1662 = vmatmul.bf16.gmra.mxu0 %v1647
        %v1663 = vpop.f32.mrf.mxu0
        %v1664 = vadd.f32 %v1626, %v1663
        %v1665 = vpop.f32.mrf.mxu0
        %v1666 = vadd.f32 %v1631, %v1665
        %1667 = vdwg.mxu0
        %1668 = vmatpush.bf16.msra.mxu0 0
        %1669 = vmatpush.bf16.msra.mxu0 0
        %1670 = vmatpush.bf16.msra.mxu0 0
        %1671 = vmatpush.bf16.msra.mxu0 0
        %1672 = vmatpush.bf16.msra.mxu0 0
        %1673 = vmatpush.bf16.msra.mxu0 0
        %1674 = vmatpush.bf16.msra.mxu0 %v1604
        %1675 = vmatpush.bf16.msra.mxu0 %v1602
        %1676 = vmatmul.bf16.gmra.mxu0 %v1644
        %v1677 = vpop.f32.mrf.mxu0
        %v1678 = vadd.f32 %v1616, %v1677
        %v1679 = vpop.f32.mrf.mxu0
        %v1680 = vadd.f32 %v1621, %v1679
        %1681 = vmatmul.bf16.gmra.mxu0 %v1647
        %v1682 = vpop.f32.mrf.mxu0
        %v1683 = vadd.f32 %v1626, %v1682
        %v1684 = vpop.f32.mrf.mxu0
        %v1685 = vadd.f32 %v1631, %v1684
        %1686 = vdwg.mxu0
        %v1687 = vmax.f32 %v1659, 0.0
        %v1688 = vmax.f32 %v1678, 0.0
        %v1689 = vmax.f32 %v1661, 0.0
        %v1690 = vmax.f32 %v1680, 0.0
        %v1691 = vmax.f32 %v1664, 0.0
        %v1692 = vmax.f32 %v1683, 0.0
        %v1693 = vmax.f32 %v1666, 0.0
        %v1694 = vmax.f32 %v1685, 0.0
        %v1695 = vpack.c.bf16 %v1689, %v1687
        %v1696 = vpack.c.bf16 %v1690, %v1688
        %v1697 = vpack.c.bf16 %v1693, %v1691
        %v1698 = vpack.c.bf16 %v1694, %v1692
        %v1699 = vld [vmem:[%s519] sm:$0xf]
        %v1700 = vld [vmem:[%s519 + $0x4] sm:$0xf]
        %v1701 = vld [vmem:[%s519 + $0x8] sm:$0xf]
        %v1702 = vld [vmem:[%s519 + $0xc] sm:$0xf]
        %v1703 = vld [vmem:[%s524] sm:$0xff]
        %v1704 = vld [vmem:[%s524 + $0x8] sm:$0xff]
        %v1705 = vld [vmem:[%s524 + $0x10] sm:$0xff]
        %v1706 = vld [vmem:[%s524 + $0x18] sm:$0xff]
        %1708 = vset.pattern.permute.xlu0 0
        %1709 = vperm.xlu0 %1708, %v1703
        %v1710 = vpop.permute.xlu0 %1709
        %1713 = vset.pattern.permute.xlu0 0
        %1714 = vperm.xlu0 %1713, %v1704
        %v1715 = vpop.permute.xlu0 %1714
        %1718 = vset.pattern.permute.xlu0 0
        %1719 = vperm.xlu0 %1718, %v1705
        %v1720 = vpop.permute.xlu0 %1719
        %1723 = vset.pattern.permute.xlu0 0
        %1724 = vperm.xlu0 %1723, %v1706
        %v1725 = vpop.permute.xlu0 %1724
        %v1731 = vunpack.c.l.b16 %v1699
        %v1732 = vunpack.c.l.b16 %v1700
        %v1733 = vunpack.c.l.b16 %v1701
        %v1734 = vunpack.c.l.b16 %v1702
        %v1735 = vpack.c.b16 %v1732, %v1731
        %v1736 = vpack.c.b16 %v1734, %v1733
        %v1738 = vsel %vm316, %v1735, 0
        %v1741 = vsel %vm316, %v1736, 0
        %1743 = vmatpush.bf16.msra.mxu0 0
        %1744 = vmatpush.bf16.msra.mxu0 0
        %1745 = vmatpush.bf16.msra.mxu0 0
        %1746 = vmatpush.bf16.msra.mxu0 0
        %1747 = vmatpush.bf16.msra.mxu0 0
        %1748 = vmatpush.bf16.msra.mxu0 0
        %1749 = vmatpush.bf16.msra.mxu0 %v1697
        %1750 = vmatpush.bf16.msra.mxu0 %v1695
        %1751 = vmatmul.bf16.gmra.mxu0 %v1738
        %v1752 = vpop.f32.mrf.mxu0
        %v1753 = vadd.f32 %v1710, %v1752
        %v1754 = vpop.f32.mrf.mxu0
        %v1755 = vadd.f32 %v1715, %v1754
        %1756 = vmatmul.bf16.gmra.mxu0 %v1741
        %v1757 = vpop.f32.mrf.mxu0
        %v1758 = vadd.f32 %v1720, %v1757
        %v1759 = vpop.f32.mrf.mxu0
        %v1760 = vadd.f32 %v1725, %v1759
        %1761 = vdwg.mxu0
        %1762 = vmatpush.bf16.msra.mxu0 0
        %1763 = vmatpush.bf16.msra.mxu0 0
        %1764 = vmatpush.bf16.msra.mxu0 0
        %1765 = vmatpush.bf16.msra.mxu0 0
        %1766 = vmatpush.bf16.msra.mxu0 0
        %1767 = vmatpush.bf16.msra.mxu0 0
        %1768 = vmatpush.bf16.msra.mxu0 %v1698
        %1769 = vmatpush.bf16.msra.mxu0 %v1696
        %1770 = vmatmul.bf16.gmra.mxu0 %v1738
        %v1771 = vpop.f32.mrf.mxu0
        %v1772 = vadd.f32 %v1710, %v1771
        %v1773 = vpop.f32.mrf.mxu0
        %v1774 = vadd.f32 %v1715, %v1773
        %1775 = vmatmul.bf16.gmra.mxu0 %v1741
        %v1776 = vpop.f32.mrf.mxu0
        %v1777 = vadd.f32 %v1720, %v1776
        %v1778 = vpop.f32.mrf.mxu0
        %v1779 = vadd.f32 %v1725, %v1778
        %1780 = vdwg.mxu0
        %v1781 = vadd.f32 %v1525, %v1753
        %v1782 = vadd.f32 %v1564, %v1772
        %v1783 = vadd.f32 %v1527, %v1755
        %v1784 = vadd.f32 %v1566, %v1774
        %v1785 = vadd.f32 %v1530, %v1758
        %v1786 = vadd.f32 %v1569, %v1777
        %v1787 = vadd.f32 %v1532, %v1760
        %v1788 = vadd.f32 %v1571, %v1779
        %v1789 = vpack.c.bf16 %v1783, %v1781
        %v1790 = vpack.c.bf16 %v1784, %v1782
        %v1791 = vpack.c.bf16 %v1787, %v1785
        %v1792 = vpack.c.bf16 %v1788, %v1786
        %v1793 = vld [vmem:[%s615] sm:$0xf]
        %v1794 = vld [vmem:[%s615 + $0x4] sm:$0xf]
        %v1795 = vld [vmem:[%s615 + $0x8] sm:$0xf]
        %v1796 = vld [vmem:[%s615 + $0xc] sm:$0xf]
        %v1797 = vld [vmem:[%s620] sm:$0xff]
        %v1798 = vld [vmem:[%s620 + $0x8] sm:$0xff]
        %v1799 = vld [vmem:[%s620 + $0x10] sm:$0xff]
        %v1800 = vld [vmem:[%s620 + $0x18] sm:$0xff]
        %1802 = vset.pattern.permute.xlu0 0
        %1803 = vperm.xlu0 %1802, %v1797
        %v1804 = vpop.permute.xlu0 %1803
        %1807 = vset.pattern.permute.xlu0 0
        %1808 = vperm.xlu0 %1807, %v1798
        %v1809 = vpop.permute.xlu0 %1808
        %1812 = vset.pattern.permute.xlu0 0
        %1813 = vperm.xlu0 %1812, %v1799
        %v1814 = vpop.permute.xlu0 %1813
        %1817 = vset.pattern.permute.xlu0 0
        %1818 = vperm.xlu0 %1817, %v1800
        %v1819 = vpop.permute.xlu0 %1818
        %v1825 = vunpack.c.l.b16 %v1793
        %v1826 = vunpack.c.l.b16 %v1794
        %v1827 = vunpack.c.l.b16 %v1795
        %v1828 = vunpack.c.l.b16 %v1796
        %v1829 = vpack.c.b16 %v1826, %v1825
        %v1830 = vpack.c.b16 %v1828, %v1827
        %v1832 = vsel %vm316, %v1829, 0
        %v1835 = vsel %vm316, %v1830, 0
        %1837 = vmatpush.bf16.msra.mxu0 0
        %1838 = vmatpush.bf16.msra.mxu0 0
        %1839 = vmatpush.bf16.msra.mxu0 0
        %1840 = vmatpush.bf16.msra.mxu0 0
        %1841 = vmatpush.bf16.msra.mxu0 0
        %1842 = vmatpush.bf16.msra.mxu0 0
        %1843 = vmatpush.bf16.msra.mxu0 %v1791
        %1844 = vmatpush.bf16.msra.mxu0 %v1789
        %1845 = vmatmul.bf16.gmra.mxu0 %v1832
        %v1846 = vpop.f32.mrf.mxu0
        %v1847 = vadd.f32 %v1804, %v1846
        %v1848 = vpop.f32.mrf.mxu0
        %v1849 = vadd.f32 %v1809, %v1848
        %1850 = vmatmul.bf16.gmra.mxu0 %v1835
        %v1851 = vpop.f32.mrf.mxu0
        %v1852 = vadd.f32 %v1814, %v1851
        %v1853 = vpop.f32.mrf.mxu0
        %v1854 = vadd.f32 %v1819, %v1853
        %1855 = vdwg.mxu0
        %1856 = vmatpush.bf16.msra.mxu0 0
        %1857 = vmatpush.bf16.msra.mxu0 0
        %1858 = vmatpush.bf16.msra.mxu0 0
        %1859 = vmatpush.bf16.msra.mxu0 0
        %1860 = vmatpush.bf16.msra.mxu0 0
        %1861 = vmatpush.bf16.msra.mxu0 0
        %1862 = vmatpush.bf16.msra.mxu0 %v1792
        %1863 = vmatpush.bf16.msra.mxu0 %v1790
        %1864 = vmatmul.bf16.gmra.mxu0 %v1832
        %v1865 = vpop.f32.mrf.mxu0
        %v1866 = vadd.f32 %v1804, %v1865
        %v1867 = vpop.f32.mrf.mxu0
        %v1868 = vadd.f32 %v1809, %v1867
        %1869 = vmatmul.bf16.gmra.mxu0 %v1835
        %v1870 = vpop.f32.mrf.mxu0
        %v1871 = vadd.f32 %v1814, %v1870
        %v1872 = vpop.f32.mrf.mxu0
        %v1873 = vadd.f32 %v1819, %v1872
        %1874 = vdwg.mxu0
        %v1875 = vmax.f32 %v1847, 0.0
        %v1876 = vmax.f32 %v1866, 0.0
        %v1877 = vmax.f32 %v1849, 0.0
        %v1878 = vmax.f32 %v1868, 0.0
        %v1879 = vmax.f32 %v1852, 0.0
        %v1880 = vmax.f32 %v1871, 0.0
        %v1881 = vmax.f32 %v1854, 0.0
        %v1882 = vmax.f32 %v1873, 0.0
        %v1883 = vpack.c.bf16 %v1877, %v1875
        %v1884 = vpack.c.bf16 %v1878, %v1876
        %v1885 = vpack.c.bf16 %v1881, %v1879
        %v1886 = vpack.c.bf16 %v1882, %v1880
        %v1887 = vld [vmem:[%s711] sm:$0xf]
        %v1888 = vld [vmem:[%s711 + $0x4] sm:$0xf]
        %v1889 = vld [vmem:[%s711 + $0x8] sm:$0xf]
        %v1890 = vld [vmem:[%s711 + $0xc] sm:$0xf]
        %v1891 = vld [vmem:[%s716] sm:$0xff]
        %v1892 = vld [vmem:[%s716 + $0x8] sm:$0xff]
        %v1893 = vld [vmem:[%s716 + $0x10] sm:$0xff]
        %v1894 = vld [vmem:[%s716 + $0x18] sm:$0xff]
        %1896 = vset.pattern.permute.xlu0 0
        %1897 = vperm.xlu0 %1896, %v1891
        %v1898 = vpop.permute.xlu0 %1897
        %1901 = vset.pattern.permute.xlu0 0
        %1902 = vperm.xlu0 %1901, %v1892
        %v1903 = vpop.permute.xlu0 %1902
        %1906 = vset.pattern.permute.xlu0 0
        %1907 = vperm.xlu0 %1906, %v1893
        %v1908 = vpop.permute.xlu0 %1907
        %1911 = vset.pattern.permute.xlu0 0
        %1912 = vperm.xlu0 %1911, %v1894
        %v1913 = vpop.permute.xlu0 %1912
        %v1919 = vunpack.c.l.b16 %v1887
        %v1920 = vunpack.c.l.b16 %v1888
        %v1921 = vunpack.c.l.b16 %v1889
        %v1922 = vunpack.c.l.b16 %v1890
        %v1923 = vpack.c.b16 %v1920, %v1919
        %v1924 = vpack.c.b16 %v1922, %v1921
        %v1926 = vsel %vm316, %v1923, 0
        %v1929 = vsel %vm316, %v1924, 0
        %1931 = vmatpush.bf16.msra.mxu0 0
        %1932 = vmatpush.bf16.msra.mxu0 0
        %1933 = vmatpush.bf16.msra.mxu0 0
        %1934 = vmatpush.bf16.msra.mxu0 0
        %1935 = vmatpush.bf16.msra.mxu0 0
        %1936 = vmatpush.bf16.msra.mxu0 0
        %1937 = vmatpush.bf16.msra.mxu0 %v1885
        %1938 = vmatpush.bf16.msra.mxu0 %v1883
        %1939 = vmatmul.bf16.gmra.mxu0 %v1926
        %v1940 = vpop.f32.mrf.mxu0
        %v1941 = vadd.f32 %v1898, %v1940
        %v1942 = vpop.f32.mrf.mxu0
        %v1943 = vadd.f32 %v1903, %v1942
        %1944 = vmatmul.bf16.gmra.mxu0 %v1929
        %v1945 = vpop.f32.mrf.mxu0
        %v1946 = vadd.f32 %v1908, %v1945
        %v1947 = vpop.f32.mrf.mxu0
        %v1948 = vadd.f32 %v1913, %v1947
        %1949 = vdwg.mxu0
        %1950 = vmatpush.bf16.msra.mxu0 0
        %1951 = vmatpush.bf16.msra.mxu0 0
        %1952 = vmatpush.bf16.msra.mxu0 0
        %1953 = vmatpush.bf16.msra.mxu0 0
        %1954 = vmatpush.bf16.msra.mxu0 0
        %1955 = vmatpush.bf16.msra.mxu0 0
        %1956 = vmatpush.bf16.msra.mxu0 %v1886
        %1957 = vmatpush.bf16.msra.mxu0 %v1884
        %1958 = vmatmul.bf16.gmra.mxu0 %v1926
        %v1959 = vpop.f32.mrf.mxu0
        %v1960 = vadd.f32 %v1898, %v1959
        %v1961 = vpop.f32.mrf.mxu0
        %v1962 = vadd.f32 %v1903, %v1961
        %1963 = vmatmul.bf16.gmra.mxu0 %v1929
        %v1964 = vpop.f32.mrf.mxu0
        %v1965 = vadd.f32 %v1908, %v1964
        %v1966 = vpop.f32.mrf.mxu0
        %v1967 = vadd.f32 %v1913, %v1966
        %1968 = vdwg.mxu0
        %v1969 = vmax.f32 %v1941, 0.0
        %v1970 = vmax.f32 %v1960, 0.0
        %v1971 = vmax.f32 %v1943, 0.0
        %v1972 = vmax.f32 %v1962, 0.0
        %v1973 = vmax.f32 %v1946, 0.0
        %v1974 = vmax.f32 %v1965, 0.0
        %v1975 = vmax.f32 %v1948, 0.0
        %v1976 = vmax.f32 %v1967, 0.0
        %v1977 = vpack.c.bf16 %v1971, %v1969
        %v1978 = vpack.c.bf16 %v1972, %v1970
        %v1979 = vpack.c.bf16 %v1975, %v1973
        %v1980 = vpack.c.bf16 %v1976, %v1974
        %v1981 = vld [vmem:[%s807] sm:$0xf]
        %v1982 = vld [vmem:[%s807 + $0x4] sm:$0xf]
        %v1983 = vld [vmem:[%s807 + $0x8] sm:$0xf]
        %v1984 = vld [vmem:[%s807 + $0xc] sm:$0xf]
        %v1985 = vld [vmem:[%s812] sm:$0xff]
        %v1986 = vld [vmem:[%s812 + $0x8] sm:$0xff]
        %v1987 = vld [vmem:[%s812 + $0x10] sm:$0xff]
        %v1988 = vld [vmem:[%s812 + $0x18] sm:$0xff]
        %1990 = vset.pattern.permute.xlu0 0
        %1991 = vperm.xlu0 %1990, %v1985
        %v1992 = vpop.permute.xlu0 %1991
        %1995 = vset.pattern.permute.xlu0 0
        %1996 = vperm.xlu0 %1995, %v1986
        %v1997 = vpop.permute.xlu0 %1996
        %2000 = vset.pattern.permute.xlu0 0
        %2001 = vperm.xlu0 %2000, %v1987
        %v2002 = vpop.permute.xlu0 %2001
        %2005 = vset.pattern.permute.xlu0 0
        %2006 = vperm.xlu0 %2005, %v1988
        %v2007 = vpop.permute.xlu0 %2006
        %v2013 = vunpack.c.l.b16 %v1981
        %v2014 = vunpack.c.l.b16 %v1982
        %v2015 = vunpack.c.l.b16 %v1983
        %v2016 = vunpack.c.l.b16 %v1984
        %v2017 = vpack.c.b16 %v2014, %v2013
        %v2018 = vpack.c.b16 %v2016, %v2015
        %v2020 = vsel %vm316, %v2017, 0
        %v2023 = vsel %vm316, %v2018, 0
        %2025 = vmatpush.bf16.msra.mxu0 0
        %2026 = vmatpush.bf16.msra.mxu0 0
        %2027 = vmatpush.bf16.msra.mxu0 0
        %2028 = vmatpush.bf16.msra.mxu0 0
        %2029 = vmatpush.bf16.msra.mxu0 0
        %2030 = vmatpush.bf16.msra.mxu0 0
        %2031 = vmatpush.bf16.msra.mxu0 %v1979
        %2032 = vmatpush.bf16.msra.mxu0 %v1977
        %2033 = vmatmul.bf16.gmra.mxu0 %v2020
        %v2034 = vpop.f32.mrf.mxu0
        %v2035 = vadd.f32 %v1992, %v2034
        %v2036 = vpop.f32.mrf.mxu0
        %v2037 = vadd.f32 %v1997, %v2036
        %2038 = vmatmul.bf16.gmra.mxu0 %v2023
        %v2039 = vpop.f32.mrf.mxu0
        %v2040 = vadd.f32 %v2002, %v2039
        %v2041 = vpop.f32.mrf.mxu0
        %v2042 = vadd.f32 %v2007, %v2041
        %2043 = vdwg.mxu0
        %2044 = vmatpush.bf16.msra.mxu0 0
        %2045 = vmatpush.bf16.msra.mxu0 0
        %2046 = vmatpush.bf16.msra.mxu0 0
        %2047 = vmatpush.bf16.msra.mxu0 0
        %2048 = vmatpush.bf16.msra.mxu0 0
        %2049 = vmatpush.bf16.msra.mxu0 0
        %2050 = vmatpush.bf16.msra.mxu0 %v1980
        %2051 = vmatpush.bf16.msra.mxu0 %v1978
        %2052 = vmatmul.bf16.gmra.mxu0 %v2020
        %v2053 = vpop.f32.mrf.mxu0
        %v2054 = vadd.f32 %v1992, %v2053
        %v2055 = vpop.f32.mrf.mxu0
        %v2056 = vadd.f32 %v1997, %v2055
        %2057 = vmatmul.bf16.gmra.mxu0 %v2023
        %v2058 = vpop.f32.mrf.mxu0
        %v2059 = vadd.f32 %v2002, %v2058
        %v2060 = vpop.f32.mrf.mxu0
        %v2061 = vadd.f32 %v2007, %v2060
        %2062 = vdwg.mxu0
        %v2063 = vpack.c.bf16 %v2037, %v2035
        %v2064 = vpack.c.bf16 %v2056, %v2054
        %v2065 = vpack.c.bf16 %v2042, %v2040
        %v2066 = vpack.c.bf16 %v2061, %v2059
        %v2067 = vld [vmem:[%s895] sm:$0xf]
        %v2068 = vld [vmem:[%s895 + $0x4] sm:$0xf]
        %v2069 = vld [vmem:[%s895 + $0x8] sm:$0xf]
        %v2070 = vld [vmem:[%s895 + $0xc] sm:$0xf]
        %v2071 = vld [vmem:[%s900] sm:$0xff]
        %v2072 = vld [vmem:[%s900 + $0x8] sm:$0xff]
        %v2073 = vld [vmem:[%s900 + $0x10] sm:$0xff]
        %v2074 = vld [vmem:[%s900 + $0x18] sm:$0xff]
        %2076 = vset.pattern.permute.xlu0 0
        %2077 = vperm.xlu0 %2076, %v2071
        %v2078 = vpop.permute.xlu0 %2077
        %2081 = vset.pattern.permute.xlu0 0
        %2082 = vperm.xlu0 %2081, %v2072
        %v2083 = vpop.permute.xlu0 %2082
        %2086 = vset.pattern.permute.xlu0 0
        %2087 = vperm.xlu0 %2086, %v2073
        %v2088 = vpop.permute.xlu0 %2087
        %2091 = vset.pattern.permute.xlu0 0
        %2092 = vperm.xlu0 %2091, %v2074
        %v2093 = vpop.permute.xlu0 %2092
        %v2099 = vunpack.c.l.b16 %v2067
        %v2100 = vunpack.c.l.b16 %v2068
        %v2101 = vunpack.c.l.b16 %v2069
        %v2102 = vunpack.c.l.b16 %v2070
        %v2103 = vpack.c.b16 %v2100, %v2099
        %v2104 = vpack.c.b16 %v2102, %v2101
        %v2106 = vsel %vm316, %v2103, 0
        %v2109 = vsel %vm316, %v2104, 0
        %2111 = vmatpush.bf16.msra.mxu0 0
        %2112 = vmatpush.bf16.msra.mxu0 0
        %2113 = vmatpush.bf16.msra.mxu0 0
        %2114 = vmatpush.bf16.msra.mxu0 0
        %2115 = vmatpush.bf16.msra.mxu0 0
        %2116 = vmatpush.bf16.msra.mxu0 0
        %2117 = vmatpush.bf16.msra.mxu0 %v2065
        %2118 = vmatpush.bf16.msra.mxu0 %v2063
        %2119 = vmatmul.bf16.gmra.mxu0 %v2106
        %v2120 = vpop.f32.mrf.mxu0
        %v2121 = vadd.f32 %v2078, %v2120
        %v2122 = vpop.f32.mrf.mxu0
        %v2123 = vadd.f32 %v2083, %v2122
        %2124 = vmatmul.bf16.gmra.mxu0 %v2109
        %v2125 = vpop.f32.mrf.mxu0
        %v2126 = vadd.f32 %v2088, %v2125
        %v2127 = vpop.f32.mrf.mxu0
        %v2128 = vadd.f32 %v2093, %v2127
        %2129 = vdwg.mxu0
        %2130 = vmatpush.bf16.msra.mxu0 0
        %2131 = vmatpush.bf16.msra.mxu0 0
        %2132 = vmatpush.bf16.msra.mxu0 0
        %2133 = vmatpush.bf16.msra.mxu0 0
        %2134 = vmatpush.bf16.msra.mxu0 0
        %2135 = vmatpush.bf16.msra.mxu0 0
        %2136 = vmatpush.bf16.msra.mxu0 %v2066
        %2137 = vmatpush.bf16.msra.mxu0 %v2064
        %2138 = vmatmul.bf16.gmra.mxu0 %v2106
        %v2139 = vpop.f32.mrf.mxu0
        %v2140 = vadd.f32 %v2078, %v2139
        %v2141 = vpop.f32.mrf.mxu0
        %v2142 = vadd.f32 %v2083, %v2141
        %2143 = vmatmul.bf16.gmra.mxu0 %v2109
        %v2144 = vpop.f32.mrf.mxu0
        %v2145 = vadd.f32 %v2088, %v2144
        %v2146 = vpop.f32.mrf.mxu0
        %v2147 = vadd.f32 %v2093, %v2146
        %2148 = vdwg.mxu0
        %v2149 = vmax.f32 %v2121, 0.0
        %v2150 = vmax.f32 %v2140, 0.0
        %v2151 = vmax.f32 %v2123, 0.0
        %v2152 = vmax.f32 %v2142, 0.0
        %v2153 = vmax.f32 %v2126, 0.0
        %v2154 = vmax.f32 %v2145, 0.0
        %v2155 = vmax.f32 %v2128, 0.0
        %v2156 = vmax.f32 %v2147, 0.0
        %v2157 = vpack.c.bf16 %v2151, %v2149
        %v2158 = vpack.c.bf16 %v2152, %v2150
        %v2159 = vpack.c.bf16 %v2155, %v2153
        %v2160 = vpack.c.bf16 %v2156, %v2154
        %v2161 = vld [vmem:[%s991] sm:$0xf]
        %v2162 = vld [vmem:[%s991 + $0x4] sm:$0xf]
        %v2163 = vld [vmem:[%s991 + $0x8] sm:$0xf]
        %v2164 = vld [vmem:[%s991 + $0xc] sm:$0xf]
        %v2165 = vld [vmem:[%s996] sm:$0xff]
        %v2166 = vld [vmem:[%s996 + $0x8] sm:$0xff]
        %v2167 = vld [vmem:[%s996 + $0x10] sm:$0xff]
        %v2168 = vld [vmem:[%s996 + $0x18] sm:$0xff]
        %2170 = vset.pattern.permute.xlu0 0
        %2171 = vperm.xlu0 %2170, %v2165
        %v2172 = vpop.permute.xlu0 %2171
        %2175 = vset.pattern.permute.xlu0 0
        %2176 = vperm.xlu0 %2175, %v2166
        %v2177 = vpop.permute.xlu0 %2176
        %2180 = vset.pattern.permute.xlu0 0
        %2181 = vperm.xlu0 %2180, %v2167
        %v2182 = vpop.permute.xlu0 %2181
        %2185 = vset.pattern.permute.xlu0 0
        %2186 = vperm.xlu0 %2185, %v2168
        %v2187 = vpop.permute.xlu0 %2186
        %v2193 = vunpack.c.l.b16 %v2161
        %v2194 = vunpack.c.l.b16 %v2162
        %v2195 = vunpack.c.l.b16 %v2163
        %v2196 = vunpack.c.l.b16 %v2164
        %v2197 = vpack.c.b16 %v2194, %v2193
        %v2198 = vpack.c.b16 %v2196, %v2195
        %v2200 = vsel %vm316, %v2197, 0
        %v2203 = vsel %vm316, %v2198, 0
        %2205 = vmatpush.bf16.msra.mxu0 0
        %2206 = vmatpush.bf16.msra.mxu0 0
        %2207 = vmatpush.bf16.msra.mxu0 0
        %2208 = vmatpush.bf16.msra.mxu0 0
        %2209 = vmatpush.bf16.msra.mxu0 0
        %2210 = vmatpush.bf16.msra.mxu0 0
        %2211 = vmatpush.bf16.msra.mxu0 %v2159
        %2212 = vmatpush.bf16.msra.mxu0 %v2157
        %2213 = vmatmul.bf16.gmra.mxu0 %v2200
        %v2214 = vpop.f32.mrf.mxu0
        %v2215 = vadd.f32 %v2172, %v2214
        %v2216 = vpop.f32.mrf.mxu0
        %v2217 = vadd.f32 %v2177, %v2216
        %2218 = vmatmul.bf16.gmra.mxu0 %v2203
        %v2219 = vpop.f32.mrf.mxu0
        %v2220 = vadd.f32 %v2182, %v2219
        %v2221 = vpop.f32.mrf.mxu0
        %v2222 = vadd.f32 %v2187, %v2221
        %2223 = vdwg.mxu0
        %2224 = vmatpush.bf16.msra.mxu0 0
        %2225 = vmatpush.bf16.msra.mxu0 0
        %2226 = vmatpush.bf16.msra.mxu0 0
        %2227 = vmatpush.bf16.msra.mxu0 0
        %2228 = vmatpush.bf16.msra.mxu0 0
        %2229 = vmatpush.bf16.msra.mxu0 0
        %2230 = vmatpush.bf16.msra.mxu0 %v2160
        %2231 = vmatpush.bf16.msra.mxu0 %v2158
        %2232 = vmatmul.bf16.gmra.mxu0 %v2200
        %v2233 = vpop.f32.mrf.mxu0
        %v2234 = vadd.f32 %v2172, %v2233
        %v2235 = vpop.f32.mrf.mxu0
        %v2236 = vadd.f32 %v2177, %v2235
        %2237 = vmatmul.bf16.gmra.mxu0 %v2203
        %v2238 = vpop.f32.mrf.mxu0
        %v2239 = vadd.f32 %v2182, %v2238
        %v2240 = vpop.f32.mrf.mxu0
        %v2241 = vadd.f32 %v2187, %v2240
        %2242 = vdwg.mxu0
        %v2243 = vmax.f32 %v2215, 0.0
        %v2244 = vmax.f32 %v2234, 0.0
        %v2245 = vmax.f32 %v2217, 0.0
        %v2246 = vmax.f32 %v2236, 0.0
        %v2247 = vmax.f32 %v2220, 0.0
        %v2248 = vmax.f32 %v2239, 0.0
        %v2249 = vmax.f32 %v2222, 0.0
        %v2250 = vmax.f32 %v2241, 0.0
        %v2251 = vpack.c.bf16 %v2245, %v2243
        %v2252 = vpack.c.bf16 %v2246, %v2244
        %v2253 = vpack.c.bf16 %v2249, %v2247
        %v2254 = vpack.c.bf16 %v2250, %v2248
        %v2255 = vld [vmem:[%s1087] sm:$0xf]
        %v2256 = vld [vmem:[%s1087 + $0x4] sm:$0xf]
        %v2257 = vld [vmem:[%s1087 + $0x8] sm:$0xf]
        %v2258 = vld [vmem:[%s1087 + $0xc] sm:$0xf]
        %v2259 = vld [vmem:[%s1092] sm:$0xff]
        %v2260 = vld [vmem:[%s1092 + $0x8] sm:$0xff]
        %v2261 = vld [vmem:[%s1092 + $0x10] sm:$0xff]
        %v2262 = vld [vmem:[%s1092 + $0x18] sm:$0xff]
        %2264 = vset.pattern.permute.xlu0 0
        %2265 = vperm.xlu0 %2264, %v2259
        %v2266 = vpop.permute.xlu0 %2265
        %2269 = vset.pattern.permute.xlu0 0
        %2270 = vperm.xlu0 %2269, %v2260
        %v2271 = vpop.permute.xlu0 %2270
        %2274 = vset.pattern.permute.xlu0 0
        %2275 = vperm.xlu0 %2274, %v2261
        %v2276 = vpop.permute.xlu0 %2275
        %2279 = vset.pattern.permute.xlu0 0
        %2280 = vperm.xlu0 %2279, %v2262
        %v2281 = vpop.permute.xlu0 %2280
        %v2287 = vunpack.c.l.b16 %v2255
        %v2288 = vunpack.c.l.b16 %v2256
        %v2289 = vunpack.c.l.b16 %v2257
        %v2290 = vunpack.c.l.b16 %v2258
        %v2291 = vpack.c.b16 %v2288, %v2287
        %v2292 = vpack.c.b16 %v2290, %v2289
        %v2294 = vsel %vm316, %v2291, 0
        %v2297 = vsel %vm316, %v2292, 0
        %2299 = vmatpush.bf16.msra.mxu0 0
        %2300 = vmatpush.bf16.msra.mxu0 0
        %2301 = vmatpush.bf16.msra.mxu0 0
        %2302 = vmatpush.bf16.msra.mxu0 0
        %2303 = vmatpush.bf16.msra.mxu0 0
        %2304 = vmatpush.bf16.msra.mxu0 0
        %2305 = vmatpush.bf16.msra.mxu0 %v2253
        %2306 = vmatpush.bf16.msra.mxu0 %v2251
        %2307 = vmatmul.bf16.gmra.mxu0 %v2294
        %v2308 = vpop.f32.mrf.mxu0
        %v2309 = vadd.f32 %v2266, %v2308
        %v2310 = vpop.f32.mrf.mxu0
        %v2311 = vadd.f32 %v2271, %v2310
        %2312 = vmatmul.bf16.gmra.mxu0 %v2297
        %v2313 = vpop.f32.mrf.mxu0
        %v2314 = vadd.f32 %v2276, %v2313
        %v2315 = vpop.f32.mrf.mxu0
        %v2316 = vadd.f32 %v2281, %v2315
        %2317 = vdwg.mxu0
        %2318 = vmatpush.bf16.msra.mxu0 0
        %2319 = vmatpush.bf16.msra.mxu0 0
        %2320 = vmatpush.bf16.msra.mxu0 0
        %2321 = vmatpush.bf16.msra.mxu0 0
        %2322 = vmatpush.bf16.msra.mxu0 0
        %2323 = vmatpush.bf16.msra.mxu0 0
        %2324 = vmatpush.bf16.msra.mxu0 %v2254
        %2325 = vmatpush.bf16.msra.mxu0 %v2252
        %2326 = vmatmul.bf16.gmra.mxu0 %v2294
        %v2327 = vpop.f32.mrf.mxu0
        %v2328 = vadd.f32 %v2266, %v2327
        %v2329 = vpop.f32.mrf.mxu0
        %v2330 = vadd.f32 %v2271, %v2329
        %2331 = vmatmul.bf16.gmra.mxu0 %v2297
        %v2332 = vpop.f32.mrf.mxu0
        %v2333 = vadd.f32 %v2276, %v2332
        %v2334 = vpop.f32.mrf.mxu0
        %v2335 = vadd.f32 %v2281, %v2334
        %2336 = vdwg.mxu0
        %v2337 = vadd.f32 %v1545, %v2309
        %v2338 = vadd.f32 %v1584, %v2328
        %v2339 = vadd.f32 %v1547, %v2311
        %v2340 = vadd.f32 %v1586, %v2330
        %v2341 = vadd.f32 %v1550, %v2314
        %v2342 = vadd.f32 %v1589, %v2333
        %v2343 = vadd.f32 %v1552, %v2316
        %v2344 = vadd.f32 %v1591, %v2335
        %v2345 = vpack.c.bf16 %v2339, %v2337
        %v2346 = vpack.c.bf16 %v2340, %v2338
        %v2347 = vpack.c.bf16 %v2343, %v2341
        %v2348 = vpack.c.bf16 %v2344, %v2342
        %v2349 = vld [vmem:[%s1183] sm:$0xf]
        %v2350 = vld [vmem:[%s1183 + $0x4] sm:$0xf]
        %v2351 = vld [vmem:[%s1183 + $0x8] sm:$0xf]
        %v2352 = vld [vmem:[%s1183 + $0xc] sm:$0xf]
        %v2353 = vld [vmem:[%s1188] sm:$0xff]
        %v2354 = vld [vmem:[%s1188 + $0x8] sm:$0xff]
        %v2355 = vld [vmem:[%s1188 + $0x10] sm:$0xff]
        %v2356 = vld [vmem:[%s1188 + $0x18] sm:$0xff]
        %2358 = vset.pattern.permute.xlu0 0
        %2359 = vperm.xlu0 %2358, %v2353
        %v2360 = vpop.permute.xlu0 %2359
        %2363 = vset.pattern.permute.xlu0 0
        %2364 = vperm.xlu0 %2363, %v2354
        %v2365 = vpop.permute.xlu0 %2364
        %2368 = vset.pattern.permute.xlu0 0
        %2369 = vperm.xlu0 %2368, %v2355
        %v2370 = vpop.permute.xlu0 %2369
        %2373 = vset.pattern.permute.xlu0 0
        %2374 = vperm.xlu0 %2373, %v2356
        %v2375 = vpop.permute.xlu0 %2374
        %v2381 = vunpack.c.l.b16 %v2349
        %v2382 = vunpack.c.l.b16 %v2350
        %v2383 = vunpack.c.l.b16 %v2351
        %v2384 = vunpack.c.l.b16 %v2352
        %v2385 = vpack.c.b16 %v2382, %v2381
        %v2386 = vpack.c.b16 %v2384, %v2383
        %v2388 = vsel %vm316, %v2385, 0
        %v2391 = vsel %vm316, %v2386, 0
        %2393 = vmatpush.bf16.msra.mxu0 0
        %2394 = vmatpush.bf16.msra.mxu0 0
        %2395 = vmatpush.bf16.msra.mxu0 0
        %2396 = vmatpush.bf16.msra.mxu0 0
        %2397 = vmatpush.bf16.msra.mxu0 0
        %2398 = vmatpush.bf16.msra.mxu0 0
        %2399 = vmatpush.bf16.msra.mxu0 %v2347
        %2400 = vmatpush.bf16.msra.mxu0 %v2345
        %2401 = vmatmul.bf16.gmra.mxu0 %v2388
        %v2402 = vpop.f32.mrf.mxu0
        %v2403 = vadd.f32 %v2360, %v2402
        %v2404 = vpop.f32.mrf.mxu0
        %v2405 = vadd.f32 %v2365, %v2404
        %2406 = vmatmul.bf16.gmra.mxu0 %v2391
        %v2407 = vpop.f32.mrf.mxu0
        %v2408 = vadd.f32 %v2370, %v2407
        %v2409 = vpop.f32.mrf.mxu0
        %v2410 = vadd.f32 %v2375, %v2409
        %2411 = vdwg.mxu0
        %2412 = vmatpush.bf16.msra.mxu0 0
        %2413 = vmatpush.bf16.msra.mxu0 0
        %2414 = vmatpush.bf16.msra.mxu0 0
        %2415 = vmatpush.bf16.msra.mxu0 0
        %2416 = vmatpush.bf16.msra.mxu0 0
        %2417 = vmatpush.bf16.msra.mxu0 0
        %2418 = vmatpush.bf16.msra.mxu0 %v2348
        %2419 = vmatpush.bf16.msra.mxu0 %v2346
        %2420 = vmatmul.bf16.gmra.mxu0 %v2388
        %v2421 = vpop.f32.mrf.mxu0
        %v2422 = vadd.f32 %v2360, %v2421
        %v2423 = vpop.f32.mrf.mxu0
        %v2424 = vadd.f32 %v2365, %v2423
        %2425 = vmatmul.bf16.gmra.mxu0 %v2391
        %v2426 = vpop.f32.mrf.mxu0
        %v2427 = vadd.f32 %v2370, %v2426
        %v2428 = vpop.f32.mrf.mxu0
        %v2429 = vadd.f32 %v2375, %v2428
        %2430 = vdwg.mxu0
        %v2431 = vmax.f32 %v2403, 0.0
        %v2432 = vmax.f32 %v2422, 0.0
        %v2433 = vmax.f32 %v2405, 0.0
        %v2434 = vmax.f32 %v2424, 0.0
        %v2435 = vmax.f32 %v2408, 0.0
        %v2436 = vmax.f32 %v2427, 0.0
        %v2437 = vmax.f32 %v2410, 0.0
        %v2438 = vmax.f32 %v2429, 0.0
        %v2439 = vpack.c.bf16 %v2433, %v2431
        %v2440 = vpack.c.bf16 %v2434, %v2432
        %v2441 = vpack.c.bf16 %v2437, %v2435
        %v2442 = vpack.c.bf16 %v2438, %v2436
        %v2443 = vld [vmem:[%s1279] sm:$0xf]
        %v2444 = vld [vmem:[%s1279 + $0x4] sm:$0xf]
        %v2445 = vld [vmem:[%s1279 + $0x8] sm:$0xf]
        %v2446 = vld [vmem:[%s1279 + $0xc] sm:$0xf]
        %v2447 = vld [vmem:[%s1284] sm:$0xff]
        %v2448 = vld [vmem:[%s1284 + $0x8] sm:$0xff]
        %v2449 = vld [vmem:[%s1284 + $0x10] sm:$0xff]
        %v2450 = vld [vmem:[%s1284 + $0x18] sm:$0xff]
        %2452 = vset.pattern.permute.xlu0 0
        %2453 = vperm.xlu0 %2452, %v2447
        %v2454 = vpop.permute.xlu0 %2453
        %2457 = vset.pattern.permute.xlu0 0
        %2458 = vperm.xlu0 %2457, %v2448
        %v2459 = vpop.permute.xlu0 %2458
        %2462 = vset.pattern.permute.xlu0 0
        %2463 = vperm.xlu0 %2462, %v2449
        %v2464 = vpop.permute.xlu0 %2463
        %2467 = vset.pattern.permute.xlu0 0
        %2468 = vperm.xlu0 %2467, %v2450
        %v2469 = vpop.permute.xlu0 %2468
        %v2475 = vunpack.c.l.b16 %v2443
        %v2476 = vunpack.c.l.b16 %v2444
        %v2477 = vunpack.c.l.b16 %v2445
        %v2478 = vunpack.c.l.b16 %v2446
        %v2479 = vpack.c.b16 %v2476, %v2475
        %v2480 = vpack.c.b16 %v2478, %v2477
        %v2482 = vsel %vm316, %v2479, 0
        %v2485 = vsel %vm316, %v2480, 0
        %2487 = vmatpush.bf16.msra.mxu0 0
        %2488 = vmatpush.bf16.msra.mxu0 0
        %2489 = vmatpush.bf16.msra.mxu0 0
        %2490 = vmatpush.bf16.msra.mxu0 0
        %2491 = vmatpush.bf16.msra.mxu0 0
        %2492 = vmatpush.bf16.msra.mxu0 0
        %2493 = vmatpush.bf16.msra.mxu0 %v2441
        %2494 = vmatpush.bf16.msra.mxu0 %v2439
        %2495 = vmatmul.bf16.gmra.mxu0 %v2482
        %v2496 = vpop.f32.mrf.mxu0
        %v2497 = vadd.f32 %v2454, %v2496
        %v2498 = vpop.f32.mrf.mxu0
        %v2499 = vadd.f32 %v2459, %v2498
        %2500 = vmatmul.bf16.gmra.mxu0 %v2485
        %v2501 = vpop.f32.mrf.mxu0
        %v2502 = vadd.f32 %v2464, %v2501
        %v2503 = vpop.f32.mrf.mxu0
        %v2504 = vadd.f32 %v2469, %v2503
        %2505 = vdwg.mxu0
        %2506 = vmatpush.bf16.msra.mxu0 0
        %2507 = vmatpush.bf16.msra.mxu0 0
        %2508 = vmatpush.bf16.msra.mxu0 0
        %2509 = vmatpush.bf16.msra.mxu0 0
        %2510 = vmatpush.bf16.msra.mxu0 0
        %2511 = vmatpush.bf16.msra.mxu0 0
        %2512 = vmatpush.bf16.msra.mxu0 %v2442
        %2513 = vmatpush.bf16.msra.mxu0 %v2440
        %2514 = vmatmul.bf16.gmra.mxu0 %v2482
        %v2515 = vpop.f32.mrf.mxu0
        %v2516 = vadd.f32 %v2454, %v2515
        %v2517 = vpop.f32.mrf.mxu0
        %v2518 = vadd.f32 %v2459, %v2517
        %2519 = vmatmul.bf16.gmra.mxu0 %v2485
        %v2520 = vpop.f32.mrf.mxu0
        %v2521 = vadd.f32 %v2464, %v2520
        %v2522 = vpop.f32.mrf.mxu0
        %v2523 = vadd.f32 %v2469, %v2522
        %2524 = vdwg.mxu0
        %v2525 = vmax.f32 %v2497, 0.0
        %v2526 = vmax.f32 %v2516, 0.0
        %v2527 = vmax.f32 %v2499, 0.0
        %v2528 = vmax.f32 %v2518, 0.0
        %v2529 = vmax.f32 %v2502, 0.0
        %v2530 = vmax.f32 %v2521, 0.0
        %v2531 = vmax.f32 %v2504, 0.0
        %v2532 = vmax.f32 %v2523, 0.0
        %v2533 = vpack.c.bf16 %v2527, %v2525
        %v2534 = vpack.c.bf16 %v2528, %v2526
        %v2535 = vpack.c.bf16 %v2531, %v2529
        %v2536 = vpack.c.bf16 %v2532, %v2530
        %v2537 = vld [vmem:[%s1375] sm:$0xf]
        %v2538 = vld [vmem:[%s1375 + $0x4] sm:$0xf]
        %v2539 = vld [vmem:[%s1375 + $0x8] sm:$0xf]
        %v2540 = vld [vmem:[%s1375 + $0xc] sm:$0xf]
        %v2541 = vld [vmem:[%s1380] sm:$0xff]
        %v2542 = vld [vmem:[%s1380 + $0x8] sm:$0xff]
        %v2543 = vld [vmem:[%s1380 + $0x10] sm:$0xff]
        %v2544 = vld [vmem:[%s1380 + $0x18] sm:$0xff]
        %2546 = vset.pattern.permute.xlu0 0
        %2547 = vperm.xlu0 %2546, %v2541
        %v2548 = vpop.permute.xlu0 %2547
        %2551 = vset.pattern.permute.xlu0 0
        %2552 = vperm.xlu0 %2551, %v2542
        %v2553 = vpop.permute.xlu0 %2552
        %2555 = vset.pattern.permute.xlu0 0
        %2556 = vperm.xlu0 %2555, %v2543
        %v2557 = vpop.permute.xlu0 %2556
        %2559 = vset.pattern.permute.xlu0 0
        %2560 = vperm.xlu0 %2559, %v2544
        %v2561 = vpop.permute.xlu0 %2560
        %v2566 = vunpack.c.l.b16 %v2537
        %v2567 = vunpack.c.l.b16 %v2538
        %v2568 = vunpack.c.l.b16 %v2539
        %v2569 = vunpack.c.l.b16 %v2540
        %v2570 = vpack.c.b16 %v2567, %v2566
        %v2571 = vpack.c.b16 %v2569, %v2568
        %v2573 = vsel %vm316, %v2570, 0
        %v2576 = vsel %vm316, %v2571, 0
        %2578 = vmatpush.bf16.msra.mxu0 0
        %2579 = vmatpush.bf16.msra.mxu0 0
        %2580 = vmatpush.bf16.msra.mxu0 0
        %2581 = vmatpush.bf16.msra.mxu0 0
        %2582 = vmatpush.bf16.msra.mxu0 0
        %2583 = vmatpush.bf16.msra.mxu0 0
        %2584 = vmatpush.bf16.msra.mxu0 %v2535
        %2585 = vmatpush.bf16.msra.mxu0 %v2533
        %2586 = vmatmul.bf16.gmra.mxu0 %v2573
        %v2587 = vpop.f32.mrf.mxu0
        %v2588 = vadd.f32 %v2548, %v2587
        %v2589 = vpop.f32.mrf.mxu0
        %2590 = vmatmul.bf16.gmra.mxu0 %v2576
        %v2591 = vpop.f32.mrf.mxu0
        %v2592 = vpop.f32.mrf.mxu0
        %2593 = vdwg.mxu0
        %2594 = vmatpush.bf16.msra.mxu0 0
        %2595 = vmatpush.bf16.msra.mxu0 0
        %2596 = vmatpush.bf16.msra.mxu0 0
        %2597 = vmatpush.bf16.msra.mxu0 0
        %2598 = vmatpush.bf16.msra.mxu0 0
        %2599 = vmatpush.bf16.msra.mxu0 0
        %2600 = vmatpush.bf16.msra.mxu0 %v2536
        %2601 = vmatpush.bf16.msra.mxu0 %v2534
        %2602 = vmatmul.bf16.gmra.mxu0 %v2573
        %v2603 = vpop.f32.mrf.mxu0
        %v2604 = vadd.f32 %v2548, %v2603
        %v2605 = vpop.f32.mrf.mxu0
        %2606 = vmatmul.bf16.gmra.mxu0 %v2576
        %v2607 = vpop.f32.mrf.mxu0
        %v2608 = vpop.f32.mrf.mxu0
        %2609 = vdwg.mxu0
        %v2610 = vand.u32 2147483647, %v2588
        %v2611 = vand.u32 2147483647, %v2604
        %v2612 = vsub.f32 0.0, %v2610
        %v2613 = vsub.f32 0.0, %v2611
        %v2614 = vmul.f32 %v2612, 1.442695
        %v2615 = vpow.pop %v2614
        %v2616 = vmul.f32 %v2613, 1.442695
        %v2617 = vpow.pop %v2616
        %v2618 = vadd.f32 %v2615, 1.0
        %v2619 = vlog2.pop %v2618
        %v2620 = vmul.f32 %v2619, 0.6931472
        %v2621 = vmul.f32 -0.5, %v2615
        %v2622 = vadd.f32 %v2621, 1.0
        %v2623 = vmul.f32 %v2622, %v2615
        %v2624 = vand.u32 2147483647, %v2615
        %vm2625 = vcmp.lt.f32.partialorder %v2624, 0.0004427343
        %v2626 = vsel %vm2625, %v2623, %v2620
        %v2627 = vadd.f32 %v2617, 1.0
        %v2628 = vlog2.pop %v2627
        %v2629 = vmul.f32 %v2628, 0.6931472
        %v2630 = vmul.f32 -0.5, %v2617
        %v2631 = vadd.f32 %v2630, 1.0
        %v2632 = vmul.f32 %v2631, %v2617
        %v2633 = vand.u32 2147483647, %v2617
        %vm2634 = vcmp.lt.f32.partialorder %v2633, 0.0004427343
        %v2635 = vsel %vm2634, %v2632, %v2629
        %v2636 = vmax.f32 %v2588, 0.0
        %v2637 = vmax.f32 %v2604, 0.0
        %v2638 = vadd.f32 %v2626, %v2636
        %v2639 = vadd.f32 %v2635, %v2637
        %v2642 = vrot.slane %v2639, 7
        %v2643 = vsel %vm1483, %v2638, %v2642
        %2645 = vst.msk [vmem:[%s246 + $0x2] sm:$0x3] %vm1489, %v2643
        %s2646 = sand.u32 %s116, 1
        %s2647 = scalar_lea.sflag [#allocation5], %s2646
        %s2648 = sand.u32 %s116, 1
        %s2649 = smul.addr %s2648, 4
        %s2650 = scalar_lea.vmem [#allocation6], %s2649
        // Predicated region
        $region64: #{tpu_custom_call.1} parent=54 // pred_check
          %p2651 = pneg %p126
        $region65: #{tpu_custom_call.1} parent=54 // pred_check_branch
          %2653 = sbr.rel (%p2651) target = $region67
        $region66: #{tpu_custom_call.1} parent=54 // pred_region
          %s2654 = smul.u32 4, %s19
          %2656 = vsyncadd %s2647, 0
          %s2657 = scalar_lea.hbm %s4, %s2654
          %s2659 = sshll.u32 %s2650, 4
          %s2660 = int_to_ptr.vmem [resolvable:$true] %s2659
          %s2661 = sshll.u32 %s2657, 4
          %s2662 = int_to_ptr.hbm [resolvable:$true] %s2661
          %2664 = dma.vmem_to_hbm [thread:$0]  %s2660, 64, %s2662, %s2647
        $region67: #{tpu_custom_call.1} parent=54 // pred_fallthru
          _
      $region55: #{tpu_custom_call.1} parent=5 // pred_fallthru
        _
      %p2665 = scmp.le.s32.totalorder 2, %s14
      // Predicated region
      $region68: #{tpu_custom_call.1} parent=5 // pred_check
        %p2666 = pneg %p2665
      $region69: #{tpu_custom_call.1} parent=5 // pred_check_branch
        %2668 = sbr.rel (%p2666) target = $region71
      $region70: #{tpu_custom_call.1} parent=5 // pred_region
        %s2669 = ssub.s32 %s14, 2
        // Predicated region
        $region72: #{tpu_custom_call.1} parent=70 // pred_check
          %p2670 = pneg %p132
        $region73: #{tpu_custom_call.1} parent=70 // pred_check_branch
          %2672 = sbr.rel (%p2670) target = $region75
        $region74: #{tpu_custom_call.1} parent=70 // pred_region
          %s2673 = sand.u32 %s117, 1
          %s2674 = scalar_lea.sflag [#allocation5], %s2673
          %s2675 = sand.u32 %s117, 1
          %s2676 = smul.addr %s2675, 4
          %s2677 = scalar_lea.vmem [#allocation6], %s2676
          %2679 = dma.done %s2674, 64
        $region75: #{tpu_custom_call.1} parent=70 // pred_fallthru
          _
      $region71: #{tpu_custom_call.1} parent=5 // pred_fallthru
        _
    $region6: #{tpu_custom_call.1} parent=1 // loop_footer
      %s18 = sadd.s32 1, %s14
    $region7: #{tpu_custom_call.1} parent=1 // loop_footer_branch
      %13 = sbr.rel target = $region3
    $region8: #{tpu_custom_call.1} parent=1 // loop_exit
      _
    %2680 = vsyncpa [#allocation4], 1
    %s2681 = scalar_lea.sflag [#allocation4], 1
    %2682 = vsyncpa %s2681, 1
    %2683 = vsyncpa [#allocation5], 1
    %s2684 = scalar_lea.sflag [#allocation5], 1
    %2685 = vsyncpa %s2684, 1

</llo_original>
